<compile_context>
chip_gen: v5e
topology: v5e:2x2
jax: 0.10.0
libtpu: 0.0.40
codegen_flags: <defaults>
</compile_context>

<pallas_src>
import jax
import jax.numpy as jnp
from jax.experimental import pallas as pl
from jax.experimental.pallas import tpu as pltpu

LN_EPS = 1e-5
_HI = jax.lax.Precision.HIGHEST


def spatial_emb_kernel(feat_ref, prop_ref, w_big_ref, wpb_ref, b1_ref,
                       gamma_ref, beta_ref, wsel_ref, avg_ref, seg_ref, out_ref):
    # feat_ref  : (tb, K)   K = num_patch*patch_dim, flattened n-major (pure reshape)
    # prop_ref  : (tb, prop_dim)
    # w_big_ref : (K, PD)   PD = patch_dim*proj_dim; block-scattered Linear feat rows
    # wpb_ref   : (prop_dim, PD)  Linear prop rows tiled across the patch_dim segments
    # b1_ref    : (1, PD)   Linear bias tiled
    # gamma_ref : (1, PD)   LayerNorm weight tiled
    # beta_ref  : (1, PD)   LayerNorm bias tiled
    # wsel_ref  : (1, PD)   SpatialEmb weight, flattened (p-major segments)
    # avg_ref   : (PD, PD)  block-diagonal averaging matrix (1/proj_dim per segment)
    # seg_ref   : (PD, proj_dim) segment-sum selector (stacked identities)
    # out_ref   : (tb, proj_dim)
    f32 = jnp.float32

    # Fused Linear over all patch_dim projection rows in one lane-dense MXU pass.
    y = jnp.dot(feat_ref[...], w_big_ref[...],
                preferred_element_type=f32, precision=_HI)
    y = y + jnp.dot(prop_ref[...], wpb_ref[...],
                    preferred_element_type=f32, precision=_HI)
    y = y + b1_ref[...]

    # Segmented LayerNorm over each proj_dim window (biased variance, as nn.LayerNorm):
    # per-segment mean / E[(y-mean)^2] via matmuls against the block-diag averaging
    # matrix -- cross-lane reductions live on the (idle) MXU instead of the XLU.
    mean = jnp.dot(y, avg_ref[...], preferred_element_type=f32, precision=_HI)
    c = y - mean
    var = jnp.dot(c * c, avg_ref[...], preferred_element_type=f32, precision=_HI)
    yn = c * jax.lax.rsqrt(var + LN_EPS)
    yn = yn * gamma_ref[...] + beta_ref[...]
    yn = jnp.maximum(yn, 0.0)                      # ReLU

    # (weight * y).sum(dim=1): weight elementwise, then segment-sum via selector matmul.
    out_ref[...] = jnp.dot(yn * wsel_ref[...], seg_ref[...],
                           preferred_element_type=f32, precision=_HI).astype(out_ref.dtype)
    # TODO(synk): dropout is a no-op in eval mode; training-mode dropout not implemented.


def _round_up(x, m):
    return ((x + m - 1) // m) * m


def spatial_emb_forward(feat, prop, params, *, block_b=1024):
    """feat: (B, num_patch, patch_dim), prop: (B, prop_dim) -> (B, proj_dim)."""
    B, num_patch, patch_dim = feat.shape
    prop_dim = prop.shape[-1]
    proj_dim = params["w1a"].shape[-1]
    K = num_patch * patch_dim
    PD = patch_dim * proj_dim

    f32 = jnp.float32
    w1a = params["w1a"].astype(f32)          # (num_patch, proj_dim)
    w1b = params["w1b"].astype(f32)          # (prop_dim,  proj_dim)
    eye_p = jnp.eye(patch_dim, dtype=f32)

    # One-time parameter folding (tiny; in production compute once / cache under jit).
    # W_big[n*P + q, p*proj + j] = w1a[n, j] * (q == p)  -> feat2d @ W_big == per-p matmuls.
    w_big = jnp.einsum('nj,qp->nqpj', w1a, eye_p).reshape(K, PD)
    wpb_big = jnp.tile(w1b, (1, patch_dim))                        # (prop_dim, PD)
    b1_big = jnp.tile(params["b1"].astype(f32), (1, patch_dim))    # (1, PD)
    gamma_big = jnp.tile(params["gamma"].astype(f32), (1, patch_dim))
    beta_big = jnp.tile(params["beta"].astype(f32), (1, patch_dim))
    wsel_big = params["weight"].astype(f32).reshape(1, PD)         # (1, PD)
    avg = jnp.kron(eye_p, jnp.full((proj_dim, proj_dim), 1.0 / proj_dim, f32))  # (PD, PD)
    seg_sum = jnp.tile(jnp.eye(proj_dim, dtype=f32), (patch_dim, 1))            # (PD, proj_dim)

    # Pure reshape (row-major contiguous): no transpose, no extra HBM traffic.
    feat2d = feat.reshape(B, K)
    # TODO(synk): feeding feat2d/prop as bf16 halves the dominant DMA bytes; kept f32
    # here so the allclose check stays at tight tolerance.

    # Batch tile: multiple of 8; when the whole batch fits one block, split it in
    # two so dimension_semantics=("parallel",) can shard across v7x's 2 TensorCores.
    B8 = _round_up(B, 8)
    if B8 <= block_b:
        tb = max(8, _round_up(pl.cdiv(B8, 2), 8))
    else:
        tb = _round_up(block_b, 8)
    grid = (pl.cdiv(B, tb),)     # last block may overhang; no jnp.pad copy of feat.

    out = pl.pallas_call(
        spatial_emb_kernel,
        out_shape=jax.ShapeDtypeStruct((B, proj_dim), jnp.float32),
        grid=grid,
        in_specs=[
            pl.BlockSpec((tb, K), lambda i: (i, 0)),
            pl.BlockSpec((tb, prop_dim), lambda i: (i, 0)),
            # Parameters: constant index maps -> fetched once, reused every step.
            pl.BlockSpec((K, PD), lambda i: (0, 0)),
            pl.BlockSpec((prop_dim, PD), lambda i: (0, 0)),
            pl.BlockSpec((1, PD), lambda i: (0, 0)),
            pl.BlockSpec((1, PD), lambda i: (0, 0)),
            pl.BlockSpec((1, PD), lambda i: (0, 0)),
            pl.BlockSpec((1, PD), lambda i: (0, 0)),
            pl.BlockSpec((PD, PD), lambda i: (0, 0)),
            pl.BlockSpec((PD, proj_dim), lambda i: (0, 0)),
        ],
        out_specs=pl.BlockSpec((tb, proj_dim), lambda i: (i, 0)),
        compiler_params=pltpu.CompilerParams(
            dimension_semantics=("parallel",)),
    )(feat2d, prop, w_big, wpb_big, b1_big, gamma_big, beta_big,
      wsel_big, avg, seg_sum)

    return out


def make_params(key, num_patch, patch_dim, prop_dim, proj_dim):
    proj_in_dim = num_patch + prop_dim
    k1, k2, k3 = jax.random.split(key, 3)
    # nn.Linear default init (uniform) replaced by deterministic normal init; semantics unchanged.
    w1 = jax.random.normal(k1, (proj_in_dim, proj_dim), jnp.float32) * 0.1
    b1 = jax.random.normal(k2, (1, proj_dim), jnp.float32) * 0.1
    # nn.init.normal_(self.weight), shape (1, num_proj=patch_dim, proj_dim) -> squeeze leading 1.
    weight = jax.random.normal(k3, (patch_dim, proj_dim), jnp.float32)
    return {
        "w1a": w1[:num_patch],              # (num_patch, proj_dim)
        "w1b": w1[num_patch:],              # (prop_dim, proj_dim)
        "b1": b1,                           # (1, proj_dim)
        "gamma": jnp.ones((1, proj_dim), jnp.float32),   # LayerNorm weight
        "beta": jnp.zeros((1, proj_dim), jnp.float32),   # LayerNorm bias
        "weight": weight,                   # (patch_dim, proj_dim)
    }


def reference(feat, prop, params):
    feat_t = jnp.transpose(feat, (0, 2, 1))
    rep = jnp.repeat(prop[:, None, :], feat_t.shape[1], axis=1)
    x = jnp.concatenate([feat_t, rep], axis=-1)
    w1 = jnp.concatenate([params["w1a"], params["w1b"]], axis=0)
    y = jnp.einsum('bpk,kj->bpj', x, w1, precision=_HI) + params["b1"]
    mean = y.mean(-1, keepdims=True)
    var = ((y - mean) ** 2).mean(-1, keepdims=True)
    y = (y - mean) / jnp.sqrt(var + LN_EPS)
    y = y * params["gamma"] + params["beta"]
    y = jnp.maximum(y, 0.0)
    return (params["weight"][None] * y).sum(1)


if __name__ == "__main__":
    # Small shapes consistent with the module (B chosen non-multiple-of-8 to
    # exercise the overhanging-last-block path).
    B, num_patch, patch_dim, prop_dim, proj_dim = 6, 16, 4, 8, 32

    key = jax.random.PRNGKey(0)
    kf, kp, kw = jax.random.split(key, 3)
    feat = jax.random.normal(kf, (B, num_patch, patch_dim), jnp.float32)
    prop = jax.random.normal(kp, (B, prop_dim), jnp.float32)
    params = make_params(kw, num_patch, patch_dim, prop_dim, proj_dim)

    z = spatial_emb_forward(feat, prop, params)
    z = jax.block_until_ready(z)

    z_ref = reference(feat, prop, params)
    assert z.shape == (B, proj_dim)
    assert jnp.allclose(z, z_ref, atol=1e-4, rtol=1e-4), "mismatch vs reference"

    print("KERNEL_OK")
</pallas_src>

<mosaic_0001>
module attributes {stable_mosaic.version = 11 : i64} {
  func.func @spatial_emb_kernel(%arg0: i32, %arg1: memref<8x64xf32, #tpu.memory_space<vmem>>, %arg2: memref<8x8xf32, #tpu.memory_space<vmem>>, %arg3: memref<64x128xf32, #tpu.memory_space<vmem>>, %arg4: memref<8x128xf32, #tpu.memory_space<vmem>>, %arg5: memref<1x128xf32, #tpu.memory_space<vmem>>, %arg6: memref<1x128xf32, #tpu.memory_space<vmem>>, %arg7: memref<1x128xf32, #tpu.memory_space<vmem>>, %arg8: memref<1x128xf32, #tpu.memory_space<vmem>>, %arg9: memref<128x128xf32, #tpu.memory_space<vmem>>, %arg10: memref<128x32xf32, #tpu.memory_space<vmem>>, %arg11: memref<8x32xf32, #tpu.memory_space<vmem>>) attributes {dimension_semantics = [#tpu.dimension_semantics<parallel>], iteration_bounds = array<i64: 1>, scalar_prefetch = 0 : i64, scratch_operands = 0 : i64, tpu.core_type = #tpu.core_type<tc>, window_params = [{transform_indices = @transform_0, window_bounds = array<i64: 8, 64>}, {transform_indices = @transform_1, window_bounds = array<i64: 8, 8>}, {pipeline_mode = #tpu.pipeline_mode<synchronous>, transform_indices = @transform_2, window_bounds = array<i64: 64, 128>}, {pipeline_mode = #tpu.pipeline_mode<synchronous>, transform_indices = @transform_3, window_bounds = array<i64: 8, 128>}, {pipeline_mode = #tpu.pipeline_mode<synchronous>, transform_indices = @transform_4, window_bounds = array<i64: 1, 128>}, {pipeline_mode = #tpu.pipeline_mode<synchronous>, transform_indices = @transform_5, window_bounds = array<i64: 1, 128>}, {pipeline_mode = #tpu.pipeline_mode<synchronous>, transform_indices = @transform_6, window_bounds = array<i64: 1, 128>}, {pipeline_mode = #tpu.pipeline_mode<synchronous>, transform_indices = @transform_7, window_bounds = array<i64: 1, 128>}, {pipeline_mode = #tpu.pipeline_mode<synchronous>, transform_indices = @transform_8, window_bounds = array<i64: 128, 128>}, {pipeline_mode = #tpu.pipeline_mode<synchronous>, transform_indices = @transform_9, window_bounds = array<i64: 128, 32>}, {transform_indices = @transform_10, window_bounds = array<i64: 8, 32>}]} {
    %c0 = arith.constant 0 : index
    %c0_0 = arith.constant 0 : index
    %0 = vector.load %arg1[%c0, %c0_0] : memref<8x64xf32, #tpu.memory_space<vmem>>, vector<8x64xf32>
    %c0_1 = arith.constant 0 : index
    %c0_2 = arith.constant 0 : index
    %1 = vector.load %arg3[%c0_1, %c0_2] : memref<64x128xf32, #tpu.memory_space<vmem>>, vector<64x128xf32>
    %cst = arith.constant dense<0.000000e+00> : vector<8x128xf32>
    %2 = tpu.matmul %0, %1, %cst {dimension_numbers = #tpu.dot_dimension_numbers<[1], [0], [0], [1], [0, 0, 1, 1], [], []>, precision = #tpu.contract_precision<fp32>} : vector<8x64xf32>, vector<64x128xf32>, vector<8x128xf32> -> vector<8x128xf32>
    %c0_3 = arith.constant 0 : index
    %c0_4 = arith.constant 0 : index
    %3 = vector.load %arg2[%c0_3, %c0_4] : memref<8x8xf32, #tpu.memory_space<vmem>>, vector<8x8xf32>
    %c0_5 = arith.constant 0 : index
    %c0_6 = arith.constant 0 : index
    %4 = vector.load %arg4[%c0_5, %c0_6] : memref<8x128xf32, #tpu.memory_space<vmem>>, vector<8x128xf32>
    %cst_7 = arith.constant dense<0.000000e+00> : vector<8x128xf32>
    %5 = tpu.matmul %3, %4, %cst_7 {dimension_numbers = #tpu.dot_dimension_numbers<[1], [0], [0], [1], [0, 0, 1, 1], [], []>, precision = #tpu.contract_precision<fp32>} : vector<8x8xf32>, vector<8x128xf32>, vector<8x128xf32> -> vector<8x128xf32>
    %6 = arith.addf %2, %5 : vector<8x128xf32>
    %c0_8 = arith.constant 0 : index
    %c0_9 = arith.constant 0 : index
    %7 = vector.load %arg5[%c0_8, %c0_9] : memref<1x128xf32, #tpu.memory_space<vmem>>, vector<1x128xf32>
    %8 = vector.broadcast %7 : vector<1x128xf32> to vector<8x128xf32>
    %9 = arith.addf %6, %8 : vector<8x128xf32>
    %c0_10 = arith.constant 0 : index
    %c0_11 = arith.constant 0 : index
    %10 = vector.load %arg9[%c0_10, %c0_11] : memref<128x128xf32, #tpu.memory_space<vmem>>, vector<128x128xf32>
    %cst_12 = arith.constant dense<0.000000e+00> : vector<8x128xf32>
    %11 = tpu.matmul %9, %10, %cst_12 {dimension_numbers = #tpu.dot_dimension_numbers<[1], [0], [0], [1], [0, 0, 1, 1], [], []>, precision = #tpu.contract_precision<fp32>} : vector<8x128xf32>, vector<128x128xf32>, vector<8x128xf32> -> vector<8x128xf32>
    %12 = arith.subf %9, %11 : vector<8x128xf32>
    %13 = arith.mulf %12, %12 : vector<8x128xf32>
    %c0_13 = arith.constant 0 : index
    %c0_14 = arith.constant 0 : index
    %14 = vector.load %arg9[%c0_13, %c0_14] : memref<128x128xf32, #tpu.memory_space<vmem>>, vector<128x128xf32>
    %cst_15 = arith.constant dense<0.000000e+00> : vector<8x128xf32>
    %15 = tpu.matmul %13, %14, %cst_15 {dimension_numbers = #tpu.dot_dimension_numbers<[1], [0], [0], [1], [0, 0, 1, 1], [], []>, precision = #tpu.contract_precision<fp32>} : vector<8x128xf32>, vector<128x128xf32>, vector<8x128xf32> -> vector<8x128xf32>
    %cst_16 = arith.constant 9.99999974E-6 : f32
    %16 = vector.broadcast %cst_16 : f32 to vector<8x128xf32>
    %17 = arith.addf %15, %16 : vector<8x128xf32>
    %18 = math.rsqrt %17 : vector<8x128xf32>
    %19 = arith.mulf %12, %18 : vector<8x128xf32>
    %c0_17 = arith.constant 0 : index
    %c0_18 = arith.constant 0 : index
    %20 = vector.load %arg6[%c0_17, %c0_18] : memref<1x128xf32, #tpu.memory_space<vmem>>, vector<1x128xf32>
    %21 = vector.broadcast %20 : vector<1x128xf32> to vector<8x128xf32>
    %22 = arith.mulf %19, %21 : vector<8x128xf32>
    %c0_19 = arith.constant 0 : index
    %c0_20 = arith.constant 0 : index
    %23 = vector.load %arg7[%c0_19, %c0_20] : memref<1x128xf32, #tpu.memory_space<vmem>>, vector<1x128xf32>
    %24 = vector.broadcast %23 : vector<1x128xf32> to vector<8x128xf32>
    %25 = arith.addf %22, %24 : vector<8x128xf32>
    %cst_21 = arith.constant 0.000000e+00 : f32
    %26 = vector.broadcast %cst_21 : f32 to vector<8x128xf32>
    %27 = arith.maximumf %25, %26 : vector<8x128xf32>
    %c0_22 = arith.constant 0 : index
    %c0_23 = arith.constant 0 : index
    %28 = vector.load %arg8[%c0_22, %c0_23] : memref<1x128xf32, #tpu.memory_space<vmem>>, vector<1x128xf32>
    %29 = vector.broadcast %28 : vector<1x128xf32> to vector<8x128xf32>
    %30 = arith.mulf %27, %29 : vector<8x128xf32>
    %c0_24 = arith.constant 0 : index
    %c0_25 = arith.constant 0 : index
    %31 = vector.load %arg10[%c0_24, %c0_25] : memref<128x32xf32, #tpu.memory_space<vmem>>, vector<128x32xf32>
    %cst_26 = arith.constant dense<0.000000e+00> : vector<8x32xf32>
    %32 = tpu.matmul %30, %31, %cst_26 {dimension_numbers = #tpu.dot_dimension_numbers<[1], [0], [0], [1], [0, 0, 1, 1], [], []>, precision = #tpu.contract_precision<fp32>} : vector<8x128xf32>, vector<128x32xf32>, vector<8x32xf32> -> vector<8x32xf32>
    %c0_27 = arith.constant 0 : index
    %c0_28 = arith.constant 0 : index
    %33 = vector.load %arg11[%c0_27, %c0_28] : memref<8x32xf32, #tpu.memory_space<vmem>>, vector<8x32xf32>
    tpu.vector_store %arg11[%c0_27, %c0_28], %32 {strides = array<i32>} : memref<8x32xf32, #tpu.memory_space<vmem>>, vector<8x32xf32>,
    return
  }
  func.func @transform_0(%arg0: i32) -> (i32, i32) {
    %c0_i32 = arith.constant 0 : i32
    %c0_i32_0 = arith.constant 0 : i32
    return %arg0, %c0_i32 : i32, i32
  }
  func.func @transform_1(%arg0: i32) -> (i32, i32) {
    %c0_i32 = arith.constant 0 : i32
    %c0_i32_0 = arith.constant 0 : i32
    return %arg0, %c0_i32 : i32, i32
  }
  func.func @transform_2(%arg0: i32) -> (i32, i32) {
    %c0_i32 = arith.constant 0 : i32
    %c0_i32_0 = arith.constant 0 : i32
    %c0_i32_1 = arith.constant 0 : i32
    return %c0_i32, %c0_i32_0 : i32, i32
  }
  func.func @transform_3(%arg0: i32) -> (i32, i32) {
    %c0_i32 = arith.constant 0 : i32
    %c0_i32_0 = arith.constant 0 : i32
    %c0_i32_1 = arith.constant 0 : i32
    return %c0_i32, %c0_i32_0 : i32, i32
  }
  func.func @transform_4(%arg0: i32) -> (i32, i32) {
    %c0_i32 = arith.constant 0 : i32
    %c0_i32_0 = arith.constant 0 : i32
    %c0_i32_1 = arith.constant 0 : i32
    return %c0_i32, %c0_i32_0 : i32, i32
  }
  func.func @transform_5(%arg0: i32) -> (i32, i32) {
    %c0_i32 = arith.constant 0 : i32
    %c0_i32_0 = arith.constant 0 : i32
    %c0_i32_1 = arith.constant 0 : i32
    return %c0_i32, %c0_i32_0 : i32, i32
  }
  func.func @transform_6(%arg0: i32) -> (i32, i32) {
    %c0_i32 = arith.constant 0 : i32
    %c0_i32_0 = arith.constant 0 : i32
    %c0_i32_1 = arith.constant 0 : i32
    return %c0_i32, %c0_i32_0 : i32, i32
  }
  func.func @transform_7(%arg0: i32) -> (i32, i32) {
    %c0_i32 = arith.constant 0 : i32
    %c0_i32_0 = arith.constant 0 : i32
    %c0_i32_1 = arith.constant 0 : i32
    return %c0_i32, %c0_i32_0 : i32, i32
  }
  func.func @transform_8(%arg0: i32) -> (i32, i32) {
    %c0_i32 = arith.constant 0 : i32
    %c0_i32_0 = arith.constant 0 : i32
    %c0_i32_1 = arith.constant 0 : i32
    return %c0_i32, %c0_i32_0 : i32, i32
  }
  func.func @transform_9(%arg0: i32) -> (i32, i32) {
    %c0_i32 = arith.constant 0 : i32
    %c0_i32_0 = arith.constant 0 : i32
    %c0_i32_1 = arith.constant 0 : i32
    return %c0_i32, %c0_i32_0 : i32, i32
  }
  func.func @transform_10(%arg0: i32) -> (i32, i32) {
    %c0_i32 = arith.constant 0 : i32
    %c0_i32_0 = arith.constant 0 : i32
    return %arg0, %c0_i32 : i32, i32
  }
}

</mosaic_0001>

<llo_original>
// kernel: tpu_custom_call.1
$region0: #{tpu_custom_call.1}
  #allocation0 [shape = 'u32[]', space=smem, size = 0x4, offset = 0x4, fixed_abs, tag = 'smem constant byte address 0x4 - core index']
  #allocation1 [shape = 'u32[72,128]{1,0:T(1,128)}', space=vmem, size = 0x9000, scoped, tag = 'internal scratch']
  %s0 = inlined_call_operand.vmem [shape: f32[6,64], index: 0, kind: input, shape index: {}]
  %s1 = inlined_call_operand.vmem [shape: f32[6,8], index: 1, kind: input, shape index: {}]
  %s2 = inlined_call_operand.hbm [shape: f32[64,128], index: 2, kind: input, shape index: {}]
  %s3 = inlined_call_operand.vmem [shape: f32[8,128], index: 3, kind: input, shape index: {}]
  %s4 = inlined_call_operand.vmem [shape: f32[1,128], index: 4, kind: input, shape index: {}]
  %s5 = inlined_call_operand.vmem [shape: f32[1,128], index: 5, kind: input, shape index: {}]
  %s6 = inlined_call_operand.vmem [shape: f32[1,128], index: 6, kind: input, shape index: {}]
  %s7 = inlined_call_operand.vmem [shape: f32[1,128], index: 7, kind: input, shape index: {}]
  %s8 = inlined_call_operand.vmem [shape: f32[128,128], index: 8, kind: input, shape index: {}]
  %s9 = inlined_call_operand.vmem [shape: f32[128,32], index: 9, kind: input, shape index: {}]
  %s10 = inlined_call_operand.hbm [shape: f32[6,32], index: 10, kind: output, shape index: {}]
  %s11 = sld [smem:[#allocation0]]
  $region54: #{tpu_custom_call.1} parent=0
    _
  %s13 = ssub.s32 1, %s11
  %s14 = scalar_select 0, %s13, %s11
  $region1: #{tpu_custom_call.1} parent=0
    #allocation2 [shape = 'u8[32768]{0}', space=vmem, size = 0x8000, scoped, tag = 'input window, operand 2, single buffered']
    #allocation3 [shape = 's32[1]{0}', space=sflag, size = 0x4, scoped, tag = 'scoped memory for tpu_custom_call.1']
    #allocation4 [shape = 's32[1]{0}', space=sflag, size = 0x4, scoped, tag = 'scoped memory for tpu_custom_call.1']
    #allocation5 [shape = 'u8[4096]{0}', space=vmem, size = 0x1000, scoped, tag = 'output window, operand 0, single buffered']
    %15 = vsyncpa [#allocation3], 0
    %16 = vsyncpa [#allocation4], 0
    // Predicated region
    $region2: #{tpu_custom_call.1} parent=1 // pred_check
      _
    $region3: #{tpu_custom_call.1} parent=1 // pred_check_branch
      %18 = sbr.rel (0) target = $region5
    $region4: #{tpu_custom_call.1} parent=1 // pred_region
      _
    $region5: #{tpu_custom_call.1} parent=1 // pred_fallthru
      _
    // Predicated region
    $region6: #{tpu_custom_call.1} parent=1 // pred_check
      _
    $region7: #{tpu_custom_call.1} parent=1 // pred_check_branch
      %20 = sbr.rel (0) target = $region9
    $region8: #{tpu_custom_call.1} parent=1 // pred_region
      _
    $region9: #{tpu_custom_call.1} parent=1 // pred_fallthru
      _
    // Predicated region
    $region10: #{tpu_custom_call.1} parent=1 // pred_check
      _
    $region11: #{tpu_custom_call.1} parent=1 // pred_check_branch
      %22 = sbr.rel (0) target = $region13
    $region12: #{tpu_custom_call.1} parent=1 // pred_region
      %24 = vsyncadd [#allocation3], 0
      %s25 = sshll.u32 %s2, 4
      %s26 = int_to_ptr.hbm [resolvable:$true] %s25
      %s27 = sshll.u32 [#allocation2], 4
      %s28 = int_to_ptr.vmem [resolvable:$true] %s27
      %33 = dma.hbm_to_vmem [thread:$0]  %s26, 1024, %s28, [#allocation3], 128, 128, 8
    $region13: #{tpu_custom_call.1} parent=1 // pred_fallthru
      _
    // Predicated region
    $region14: #{tpu_custom_call.1} parent=1 // pred_check
      _
    $region15: #{tpu_custom_call.1} parent=1 // pred_check_branch
      %35 = sbr.rel (0) target = $region17
    $region16: #{tpu_custom_call.1} parent=1 // pred_region
      _
    $region17: #{tpu_custom_call.1} parent=1 // pred_fallthru
      _
    // Predicated region
    $region18: #{tpu_custom_call.1} parent=1 // pred_check
      _
    $region19: #{tpu_custom_call.1} parent=1 // pred_check_branch
      %37 = sbr.rel (0) target = $region21
    $region20: #{tpu_custom_call.1} parent=1 // pred_region
      _
    $region21: #{tpu_custom_call.1} parent=1 // pred_fallthru
      _
    // Predicated region
    $region22: #{tpu_custom_call.1} parent=1 // pred_check
      _
    $region23: #{tpu_custom_call.1} parent=1 // pred_check_branch
      %39 = sbr.rel (0) target = $region25
    $region24: #{tpu_custom_call.1} parent=1 // pred_region
      _
    $region25: #{tpu_custom_call.1} parent=1 // pred_fallthru
      _
    // Predicated region
    $region26: #{tpu_custom_call.1} parent=1 // pred_check
      _
    $region27: #{tpu_custom_call.1} parent=1 // pred_check_branch
      %41 = sbr.rel (0) target = $region29
    $region28: #{tpu_custom_call.1} parent=1 // pred_region
      _
    $region29: #{tpu_custom_call.1} parent=1 // pred_fallthru
      _
    // Predicated region
    $region30: #{tpu_custom_call.1} parent=1 // pred_check
      _
    $region31: #{tpu_custom_call.1} parent=1 // pred_check_branch
      %43 = sbr.rel (0) target = $region33
    $region32: #{tpu_custom_call.1} parent=1 // pred_region
      _
    $region33: #{tpu_custom_call.1} parent=1 // pred_fallthru
      _
    // Predicated region
    $region34: #{tpu_custom_call.1} parent=1 // pred_check
      _
    $region35: #{tpu_custom_call.1} parent=1 // pred_check_branch
      %45 = sbr.rel (0) target = $region37
    $region36: #{tpu_custom_call.1} parent=1 // pred_region
      _
    $region37: #{tpu_custom_call.1} parent=1 // pred_fallthru
      _
    // Predicated region
    $region38: #{tpu_custom_call.1} parent=1 // pred_check
      _
    $region39: #{tpu_custom_call.1} parent=1 // pred_check_branch
      %47 = sbr.rel (0) target = $region41
    $region40: #{tpu_custom_call.1} parent=1 // pred_region
      _
    $region41: #{tpu_custom_call.1} parent=1 // pred_fallthru
      _
    // Predicated region
    $region42: #{tpu_custom_call.1} parent=1 // pred_check
      _
    $region43: #{tpu_custom_call.1} parent=1 // pred_check_branch
      %49 = sbr.rel (0) target = $region45
    $region44: #{tpu_custom_call.1} parent=1 // pred_region
      %51 = dma.done [#allocation3], 1024
    $region45: #{tpu_custom_call.1} parent=1 // pred_fallthru
      _
    %v52 = vld [vmem:[%s0] sm:$0xff]
    %v53 = vld [vmem:[#allocation2] sm:$0xff]
    %v54 = vld [vmem:[#allocation2 + $0x8] sm:$0xff]
    %v55 = vld [vmem:[#allocation2 + $0x10] sm:$0xff]
    %v56 = vld [vmem:[#allocation2 + $0x18] sm:$0xff]
    %v57 = vld [vmem:[#allocation2 + $0x20] sm:$0xff]
    %v58 = vld [vmem:[#allocation2 + $0x28] sm:$0xff]
    %v59 = vld [vmem:[#allocation2 + $0x30] sm:$0xff]
    %v60 = vld [vmem:[#allocation2 + $0x38] sm:$0xff]
    %v61 = vld [vmem:[%s1] sm:$0xff]
    %v62 = vld [vmem:[%s3] sm:$0xff]
    %vm63 = vcmask 64512
    %v65 = vsel %vm63, %v61, 0
    %67 = vmatpush.msra.mxu0 0.0
    %68 = vmatpush.msra.mxu0 0.0
    %69 = vmatpush.msra.mxu0 0.0
    %70 = vmatpush.msra.mxu0 0.0
    %71 = vmatpush.msra.mxu0 0.0
    %72 = vmatpush.msra.mxu0 0.0
    %73 = vmatpush.msra.mxu0 0.0
    %74 = vmatpush.msra.mxu0 0.0
    %75 = vmatpush.msra.mxu0 0.0
    %76 = vmatpush.msra.mxu0 0.0
    %77 = vmatpush.msra.mxu0 0.0
    %78 = vmatpush.msra.mxu0 0.0
    %79 = vmatpush.msra.mxu0 0.0
    %80 = vmatpush.msra.mxu0 0.0
    %81 = vmatpush.msra.mxu0 0.0
    %v82 = vand.u32 %v62, 4294901760
    %83 = vmatpush.msra.mxu0 %v82
    %v84 = vand.u32 %v65, 4294901760
    %v85 = vsub.f32 %v65, %v84
    %v86 = vand.u32 %v85, 4294901760
    %v87 = vsub.f32 %v85, %v86
    %v88 = vand.u32 %v87, 4294901760
    %89 = vmatmul.f32.gmra.mxu0 %v88
    %v90 = vpop.f32.mrf.mxu0
    %v91 = vadd.f32 0.0, %v90
    %92 = vdwg.mxu0
    %93 = vmatpush.msra.mxu0 0.0
    %94 = vmatpush.msra.mxu0 0.0
    %95 = vmatpush.msra.mxu0 0.0
    %96 = vmatpush.msra.mxu0 0.0
    %97 = vmatpush.msra.mxu0 0.0
    %98 = vmatpush.msra.mxu0 0.0
    %99 = vmatpush.msra.mxu0 0.0
    %100 = vmatpush.msra.mxu0 0.0
    %101 = vmatpush.msra.mxu0 0.0
    %102 = vmatpush.msra.mxu0 0.0
    %103 = vmatpush.msra.mxu0 0.0
    %104 = vmatpush.msra.mxu0 0.0
    %105 = vmatpush.msra.mxu0 0.0
    %106 = vmatpush.msra.mxu0 0.0
    %107 = vmatpush.msra.mxu0 0.0
    %v108 = vand.u32 %v62, 4294901760
    %v109 = vsub.f32 %v62, %v108
    %v110 = vand.u32 %v109, 4294901760
    %v111 = vsub.f32 %v109, %v110
    %v112 = vand.u32 %v111, 4294901760
    %113 = vmatpush.msra.mxu0 %v112
    %v114 = vand.u32 %v65, 4294901760
    %115 = vmatmul.f32.gmra.mxu0 %v114
    %v116 = vpop.f32.mrf.mxu0
    %v117 = vadd.f32 %v91, %v116
    %118 = vdwg.mxu0
    %119 = vmatpush.msra.mxu0 0.0
    %120 = vmatpush.msra.mxu0 0.0
    %121 = vmatpush.msra.mxu0 0.0
    %122 = vmatpush.msra.mxu0 0.0
    %123 = vmatpush.msra.mxu0 0.0
    %124 = vmatpush.msra.mxu0 0.0
    %125 = vmatpush.msra.mxu0 0.0
    %126 = vmatpush.msra.mxu0 0.0
    %127 = vmatpush.msra.mxu0 0.0
    %128 = vmatpush.msra.mxu0 0.0
    %129 = vmatpush.msra.mxu0 0.0
    %130 = vmatpush.msra.mxu0 0.0
    %131 = vmatpush.msra.mxu0 0.0
    %132 = vmatpush.msra.mxu0 0.0
    %133 = vmatpush.msra.mxu0 0.0
    %v134 = vand.u32 %v62, 4294901760
    %v135 = vsub.f32 %v62, %v134
    %136 = vmatpush.msra.mxu0 %v135
    %v137 = vand.u32 %v65, 4294901760
    %v138 = vsub.f32 %v65, %v137
    %139 = vmatmul.f32.gmra.mxu0 %v138
    %v140 = vpop.f32.mrf.mxu0
    %v141 = vadd.f32 %v117, %v140
    %142 = vdwg.mxu0
    %143 = vmatpush.msra.mxu0 0.0
    %144 = vmatpush.msra.mxu0 0.0
    %145 = vmatpush.msra.mxu0 0.0
    %146 = vmatpush.msra.mxu0 0.0
    %147 = vmatpush.msra.mxu0 0.0
    %148 = vmatpush.msra.mxu0 0.0
    %149 = vmatpush.msra.mxu0 0.0
    %150 = vmatpush.msra.mxu0 0.0
    %151 = vmatpush.msra.mxu0 0.0
    %152 = vmatpush.msra.mxu0 0.0
    %153 = vmatpush.msra.mxu0 0.0
    %154 = vmatpush.msra.mxu0 0.0
    %155 = vmatpush.msra.mxu0 0.0
    %156 = vmatpush.msra.mxu0 0.0
    %157 = vmatpush.msra.mxu0 0.0
    %v158 = vand.u32 %v62, 4294901760
    %159 = vmatpush.msra.mxu0 %v158
    %v160 = vand.u32 %v65, 4294901760
    %v161 = vsub.f32 %v65, %v160
    %v162 = vand.u32 %v161, 4294901760
    %163 = vmatmul.f32.gmra.mxu0 %v162
    %v164 = vpop.f32.mrf.mxu0
    %v165 = vadd.f32 %v141, %v164
    %166 = vdwg.mxu0
    %167 = vmatpush.msra.mxu0 0.0
    %168 = vmatpush.msra.mxu0 0.0
    %169 = vmatpush.msra.mxu0 0.0
    %170 = vmatpush.msra.mxu0 0.0
    %171 = vmatpush.msra.mxu0 0.0
    %172 = vmatpush.msra.mxu0 0.0
    %173 = vmatpush.msra.mxu0 0.0
    %174 = vmatpush.msra.mxu0 0.0
    %175 = vmatpush.msra.mxu0 0.0
    %176 = vmatpush.msra.mxu0 0.0
    %177 = vmatpush.msra.mxu0 0.0
    %178 = vmatpush.msra.mxu0 0.0
    %179 = vmatpush.msra.mxu0 0.0
    %180 = vmatpush.msra.mxu0 0.0
    %181 = vmatpush.msra.mxu0 0.0
    %v182 = vand.u32 %v62, 4294901760
    %v183 = vsub.f32 %v62, %v182
    %v184 = vand.u32 %v183, 4294901760
    %185 = vmatpush.msra.mxu0 %v184
    %v186 = vand.u32 %v65, 4294901760
    %187 = vmatmul.f32.gmra.mxu0 %v186
    %v188 = vpop.f32.mrf.mxu0
    %v189 = vadd.f32 %v165, %v188
    %190 = vdwg.mxu0
    %191 = vmatpush.msra.mxu0 0.0
    %192 = vmatpush.msra.mxu0 0.0
    %193 = vmatpush.msra.mxu0 0.0
    %194 = vmatpush.msra.mxu0 0.0
    %195 = vmatpush.msra.mxu0 0.0
    %196 = vmatpush.msra.mxu0 0.0
    %197 = vmatpush.msra.mxu0 0.0
    %198 = vmatpush.msra.mxu0 0.0
    %199 = vmatpush.msra.mxu0 0.0
    %200 = vmatpush.msra.mxu0 0.0
    %201 = vmatpush.msra.mxu0 0.0
    %202 = vmatpush.msra.mxu0 0.0
    %203 = vmatpush.msra.mxu0 0.0
    %204 = vmatpush.msra.mxu0 0.0
    %205 = vmatpush.msra.mxu0 0.0
    %v206 = vand.u32 %v62, 4294901760
    %207 = vmatpush.msra.mxu0 %v206
    %v208 = vand.u32 %v65, 4294901760
    %209 = vmatmul.f32.gmra.mxu0 %v208
    %v210 = vpop.f32.mrf.mxu0
    %v211 = vadd.f32 %v189, %v210
    %212 = vdwg.mxu0
    %vm213 = vcmask 523264
    %v215 = vsel %vm213, %v52, 0
    %217 = vmatpush.msra.mxu0 0.0
    %218 = vmatpush.msra.mxu0 0.0
    %219 = vmatpush.msra.mxu0 0.0
    %220 = vmatpush.msra.mxu0 0.0
    %221 = vmatpush.msra.mxu0 0.0
    %222 = vmatpush.msra.mxu0 0.0
    %223 = vmatpush.msra.mxu0 0.0
    %224 = vmatpush.msra.mxu0 0.0
    %v225 = vand.u32 %v60, 4294901760
    %226 = vmatpush.msra.mxu0 %v225
    %v227 = vand.u32 %v59, 4294901760
    %228 = vmatpush.msra.mxu0 %v227
    %v229 = vand.u32 %v58, 4294901760
    %230 = vmatpush.msra.mxu0 %v229
    %v231 = vand.u32 %v57, 4294901760
    %232 = vmatpush.msra.mxu0 %v231
    %v233 = vand.u32 %v56, 4294901760
    %234 = vmatpush.msra.mxu0 %v233
    %v235 = vand.u32 %v55, 4294901760
    %236 = vmatpush.msra.mxu0 %v235
    %v237 = vand.u32 %v54, 4294901760
    %238 = vmatpush.msra.mxu0 %v237
    %v239 = vand.u32 %v53, 4294901760
    %240 = vmatpush.msra.mxu0 %v239
    %v241 = vand.u32 %v215, 4294901760
    %v242 = vsub.f32 %v215, %v241
    %v243 = vand.u32 %v242, 4294901760
    %v244 = vsub.f32 %v242, %v243
    %v245 = vand.u32 %v244, 4294901760
    %246 = vmatmul.f32.gmra.mxu0 %v245
    %v247 = vpop.f32.mrf.mxu0
    %v248 = vadd.f32 %v211, %v247
    %249 = vdwg.mxu0
    %250 = vmatpush.msra.mxu0 0.0
    %251 = vmatpush.msra.mxu0 0.0
    %252 = vmatpush.msra.mxu0 0.0
    %253 = vmatpush.msra.mxu0 0.0
    %254 = vmatpush.msra.mxu0 0.0
    %255 = vmatpush.msra.mxu0 0.0
    %256 = vmatpush.msra.mxu0 0.0
    %257 = vmatpush.msra.mxu0 0.0
    %v258 = vand.u32 %v60, 4294901760
    %v259 = vsub.f32 %v60, %v258
    %v260 = vand.u32 %v259, 4294901760
    %v261 = vsub.f32 %v259, %v260
    %v262 = vand.u32 %v261, 4294901760
    %263 = vmatpush.msra.mxu0 %v262
    %v264 = vand.u32 %v59, 4294901760
    %v265 = vsub.f32 %v59, %v264
    %v266 = vand.u32 %v265, 4294901760
    %v267 = vsub.f32 %v265, %v266
    %v268 = vand.u32 %v267, 4294901760
    %269 = vmatpush.msra.mxu0 %v268
    %v270 = vand.u32 %v58, 4294901760
    %v271 = vsub.f32 %v58, %v270
    %v272 = vand.u32 %v271, 4294901760
    %v273 = vsub.f32 %v271, %v272
    %v274 = vand.u32 %v273, 4294901760
    %275 = vmatpush.msra.mxu0 %v274
    %v276 = vand.u32 %v57, 4294901760
    %v277 = vsub.f32 %v57, %v276
    %v278 = vand.u32 %v277, 4294901760
    %v279 = vsub.f32 %v277, %v278
    %v280 = vand.u32 %v279, 4294901760
    %281 = vmatpush.msra.mxu0 %v280
    %v282 = vand.u32 %v56, 4294901760
    %v283 = vsub.f32 %v56, %v282
    %v284 = vand.u32 %v283, 4294901760
    %v285 = vsub.f32 %v283, %v284
    %v286 = vand.u32 %v285, 4294901760
    %287 = vmatpush.msra.mxu0 %v286
    %v288 = vand.u32 %v55, 4294901760
    %v289 = vsub.f32 %v55, %v288
    %v290 = vand.u32 %v289, 4294901760
    %v291 = vsub.f32 %v289, %v290
    %v292 = vand.u32 %v291, 4294901760
    %293 = vmatpush.msra.mxu0 %v292
    %v294 = vand.u32 %v54, 4294901760
    %v295 = vsub.f32 %v54, %v294
    %v296 = vand.u32 %v295, 4294901760
    %v297 = vsub.f32 %v295, %v296
    %v298 = vand.u32 %v297, 4294901760
    %299 = vmatpush.msra.mxu0 %v298
    %v300 = vand.u32 %v53, 4294901760
    %v301 = vsub.f32 %v53, %v300
    %v302 = vand.u32 %v301, 4294901760
    %v303 = vsub.f32 %v301, %v302
    %v304 = vand.u32 %v303, 4294901760
    %305 = vmatpush.msra.mxu0 %v304
    %v306 = vand.u32 %v215, 4294901760
    %307 = vmatmul.f32.gmra.mxu0 %v306
    %v308 = vpop.f32.mrf.mxu0
    %v309 = vadd.f32 %v248, %v308
    %310 = vdwg.mxu0
    %311 = vmatpush.msra.mxu0 0.0
    %312 = vmatpush.msra.mxu0 0.0
    %313 = vmatpush.msra.mxu0 0.0
    %314 = vmatpush.msra.mxu0 0.0
    %315 = vmatpush.msra.mxu0 0.0
    %316 = vmatpush.msra.mxu0 0.0
    %317 = vmatpush.msra.mxu0 0.0
    %318 = vmatpush.msra.mxu0 0.0
    %v319 = vand.u32 %v60, 4294901760
    %v320 = vsub.f32 %v60, %v319
    %321 = vmatpush.msra.mxu0 %v320
    %v322 = vand.u32 %v59, 4294901760
    %v323 = vsub.f32 %v59, %v322
    %324 = vmatpush.msra.mxu0 %v323
    %v325 = vand.u32 %v58, 4294901760
    %v326 = vsub.f32 %v58, %v325
    %327 = vmatpush.msra.mxu0 %v326
    %v328 = vand.u32 %v57, 4294901760
    %v329 = vsub.f32 %v57, %v328
    %330 = vmatpush.msra.mxu0 %v329
    %v331 = vand.u32 %v56, 4294901760
    %v332 = vsub.f32 %v56, %v331
    %333 = vmatpush.msra.mxu0 %v332
    %v334 = vand.u32 %v55, 4294901760
    %v335 = vsub.f32 %v55, %v334
    %336 = vmatpush.msra.mxu0 %v335
    %v337 = vand.u32 %v54, 4294901760
    %v338 = vsub.f32 %v54, %v337
    %339 = vmatpush.msra.mxu0 %v338
    %v340 = vand.u32 %v53, 4294901760
    %v341 = vsub.f32 %v53, %v340
    %342 = vmatpush.msra.mxu0 %v341
    %v343 = vand.u32 %v215, 4294901760
    %v344 = vsub.f32 %v215, %v343
    %345 = vmatmul.f32.gmra.mxu0 %v344
    %v346 = vpop.f32.mrf.mxu0
    %v347 = vadd.f32 %v309, %v346
    %348 = vdwg.mxu0
    %349 = vmatpush.msra.mxu0 0.0
    %350 = vmatpush.msra.mxu0 0.0
    %351 = vmatpush.msra.mxu0 0.0
    %352 = vmatpush.msra.mxu0 0.0
    %353 = vmatpush.msra.mxu0 0.0
    %354 = vmatpush.msra.mxu0 0.0
    %355 = vmatpush.msra.mxu0 0.0
    %356 = vmatpush.msra.mxu0 0.0
    %v357 = vand.u32 %v60, 4294901760
    %358 = vmatpush.msra.mxu0 %v357
    %v359 = vand.u32 %v59, 4294901760
    %360 = vmatpush.msra.mxu0 %v359
    %v361 = vand.u32 %v58, 4294901760
    %362 = vmatpush.msra.mxu0 %v361
    %v363 = vand.u32 %v57, 4294901760
    %364 = vmatpush.msra.mxu0 %v363
    %v365 = vand.u32 %v56, 4294901760
    %366 = vmatpush.msra.mxu0 %v365
    %v367 = vand.u32 %v55, 4294901760
    %368 = vmatpush.msra.mxu0 %v367
    %v369 = vand.u32 %v54, 4294901760
    %370 = vmatpush.msra.mxu0 %v369
    %v371 = vand.u32 %v53, 4294901760
    %372 = vmatpush.msra.mxu0 %v371
    %v373 = vand.u32 %v215, 4294901760
    %v374 = vsub.f32 %v215, %v373
    %v375 = vand.u32 %v374, 4294901760
    %376 = vmatmul.f32.gmra.mxu0 %v375
    %v377 = vpop.f32.mrf.mxu0
    %v378 = vadd.f32 %v347, %v377
    %379 = vdwg.mxu0
    %380 = vmatpush.msra.mxu0 0.0
    %381 = vmatpush.msra.mxu0 0.0
    %382 = vmatpush.msra.mxu0 0.0
    %383 = vmatpush.msra.mxu0 0.0
    %384 = vmatpush.msra.mxu0 0.0
    %385 = vmatpush.msra.mxu0 0.0
    %386 = vmatpush.msra.mxu0 0.0
    %387 = vmatpush.msra.mxu0 0.0
    %v388 = vand.u32 %v60, 4294901760
    %v389 = vsub.f32 %v60, %v388
    %v390 = vand.u32 %v389, 4294901760
    %391 = vmatpush.msra.mxu0 %v390
    %v392 = vand.u32 %v59, 4294901760
    %v393 = vsub.f32 %v59, %v392
    %v394 = vand.u32 %v393, 4294901760
    %395 = vmatpush.msra.mxu0 %v394
    %v396 = vand.u32 %v58, 4294901760
    %v397 = vsub.f32 %v58, %v396
    %v398 = vand.u32 %v397, 4294901760
    %399 = vmatpush.msra.mxu0 %v398
    %v400 = vand.u32 %v57, 4294901760
    %v401 = vsub.f32 %v57, %v400
    %v402 = vand.u32 %v401, 4294901760
    %403 = vmatpush.msra.mxu0 %v402
    %v404 = vand.u32 %v56, 4294901760
    %v405 = vsub.f32 %v56, %v404
    %v406 = vand.u32 %v405, 4294901760
    %407 = vmatpush.msra.mxu0 %v406
    %v408 = vand.u32 %v55, 4294901760
    %v409 = vsub.f32 %v55, %v408
    %v410 = vand.u32 %v409, 4294901760
    %411 = vmatpush.msra.mxu0 %v410
    %v412 = vand.u32 %v54, 4294901760
    %v413 = vsub.f32 %v54, %v412
    %v414 = vand.u32 %v413, 4294901760
    %415 = vmatpush.msra.mxu0 %v414
    %v416 = vand.u32 %v53, 4294901760
    %v417 = vsub.f32 %v53, %v416
    %v418 = vand.u32 %v417, 4294901760
    %419 = vmatpush.msra.mxu0 %v418
    %v420 = vand.u32 %v215, 4294901760
    %421 = vmatmul.f32.gmra.mxu0 %v420
    %v422 = vpop.f32.mrf.mxu0
    %v423 = vadd.f32 %v378, %v422
    %424 = vdwg.mxu0
    %425 = vmatpush.msra.mxu0 0.0
    %426 = vmatpush.msra.mxu0 0.0
    %427 = vmatpush.msra.mxu0 0.0
    %428 = vmatpush.msra.mxu0 0.0
    %429 = vmatpush.msra.mxu0 0.0
    %430 = vmatpush.msra.mxu0 0.0
    %431 = vmatpush.msra.mxu0 0.0
    %432 = vmatpush.msra.mxu0 0.0
    %v433 = vand.u32 %v60, 4294901760
    %434 = vmatpush.msra.mxu0 %v433
    %v435 = vand.u32 %v59, 4294901760
    %436 = vmatpush.msra.mxu0 %v435
    %v437 = vand.u32 %v58, 4294901760
    %438 = vmatpush.msra.mxu0 %v437
    %v439 = vand.u32 %v57, 4294901760
    %440 = vmatpush.msra.mxu0 %v439
    %v441 = vand.u32 %v56, 4294901760
    %442 = vmatpush.msra.mxu0 %v441
    %v443 = vand.u32 %v55, 4294901760
    %444 = vmatpush.msra.mxu0 %v443
    %v445 = vand.u32 %v54, 4294901760
    %446 = vmatpush.msra.mxu0 %v445
    %v447 = vand.u32 %v53, 4294901760
    %448 = vmatpush.msra.mxu0 %v447
    %v449 = vand.u32 %v215, 4294901760
    %450 = vmatmul.f32.gmra.mxu0 %v449
    %v451 = vpop.f32.mrf.mxu0
    %v452 = vadd.f32 %v423, %v451
    %453 = vdwg.mxu0
    %v454 = vld [vmem:[%s4] sm:$0x1]
    %v456 = vperm.slane %v454, 0
    %v458 = vadd.f32 %v452, %v456
    %v459 = vld [vmem:[%s8] sm:$0xff]
    %v460 = vld [vmem:[%s8 + $0x8] sm:$0xff]
    %v461 = vld [vmem:[%s8 + $0x10] sm:$0xff]
    %v462 = vld [vmem:[%s8 + $0x18] sm:$0xff]
    %v463 = vld [vmem:[%s8 + $0x20] sm:$0xff]
    %v464 = vld [vmem:[%s8 + $0x28] sm:$0xff]
    %v465 = vld [vmem:[%s8 + $0x30] sm:$0xff]
    %v466 = vld [vmem:[%s8 + $0x38] sm:$0xff]
    %v467 = vld [vmem:[%s8 + $0x40] sm:$0xff]
    %v468 = vld [vmem:[%s8 + $0x48] sm:$0xff]
    %v469 = vld [vmem:[%s8 + $0x50] sm:$0xff]
    %v470 = vld [vmem:[%s8 + $0x58] sm:$0xff]
    %v471 = vld [vmem:[%s8 + $0x60] sm:$0xff]
    %v472 = vld [vmem:[%s8 + $0x68] sm:$0xff]
    %v473 = vld [vmem:[%s8 + $0x70] sm:$0xff]
    %v474 = vld [vmem:[%s8 + $0x78] sm:$0xff]
    %v475 = vand.u32 %v474, 4294901760
    %476 = vmatpush.msra.mxu0 %v475
    %v477 = vand.u32 %v473, 4294901760
    %478 = vmatpush.msra.mxu0 %v477
    %v479 = vand.u32 %v472, 4294901760
    %480 = vmatpush.msra.mxu0 %v479
    %v481 = vand.u32 %v471, 4294901760
    %482 = vmatpush.msra.mxu0 %v481
    %v483 = vand.u32 %v470, 4294901760
    %484 = vmatpush.msra.mxu0 %v483
    %v485 = vand.u32 %v469, 4294901760
    %486 = vmatpush.msra.mxu0 %v485
    %v487 = vand.u32 %v468, 4294901760
    %488 = vmatpush.msra.mxu0 %v487
    %v489 = vand.u32 %v467, 4294901760
    %490 = vmatpush.msra.mxu0 %v489
    %v491 = vand.u32 %v466, 4294901760
    %492 = vmatpush.msra.mxu0 %v491
    %v493 = vand.u32 %v465, 4294901760
    %494 = vmatpush.msra.mxu0 %v493
    %v495 = vand.u32 %v464, 4294901760
    %496 = vmatpush.msra.mxu0 %v495
    %v497 = vand.u32 %v463, 4294901760
    %498 = vmatpush.msra.mxu0 %v497
    %v499 = vand.u32 %v462, 4294901760
    %500 = vmatpush.msra.mxu0 %v499
    %v501 = vand.u32 %v461, 4294901760
    %502 = vmatpush.msra.mxu0 %v501
    %v503 = vand.u32 %v460, 4294901760
    %504 = vmatpush.msra.mxu0 %v503
    %v505 = vand.u32 %v459, 4294901760
    %506 = vmatpush.msra.mxu0 %v505
    %v507 = vand.u32 %v458, 4294901760
    %v508 = vsub.f32 %v458, %v507
    %v509 = vand.u32 %v508, 4294901760
    %v510 = vsub.f32 %v508, %v509
    %v511 = vand.u32 %v510, 4294901760
    %512 = vmatmul.f32.gmra.mxu0 %v511
    %v513 = vpop.f32.mrf.mxu0
    %v514 = vadd.f32 0.0, %v513
    %515 = vdwg.mxu0
    %v516 = vand.u32 %v474, 4294901760
    %v517 = vsub.f32 %v474, %v516
    %v518 = vand.u32 %v517, 4294901760
    %v519 = vsub.f32 %v517, %v518
    %v520 = vand.u32 %v519, 4294901760
    %521 = vmatpush.msra.mxu0 %v520
    %v522 = vand.u32 %v473, 4294901760
    %v523 = vsub.f32 %v473, %v522
    %v524 = vand.u32 %v523, 4294901760
    %v525 = vsub.f32 %v523, %v524
    %v526 = vand.u32 %v525, 4294901760
    %527 = vmatpush.msra.mxu0 %v526
    %v528 = vand.u32 %v472, 4294901760
    %v529 = vsub.f32 %v472, %v528
    %v530 = vand.u32 %v529, 4294901760
    %v531 = vsub.f32 %v529, %v530
    %v532 = vand.u32 %v531, 4294901760
    %533 = vmatpush.msra.mxu0 %v532
    %v534 = vand.u32 %v471, 4294901760
    %v535 = vsub.f32 %v471, %v534
    %v536 = vand.u32 %v535, 4294901760
    %v537 = vsub.f32 %v535, %v536
    %v538 = vand.u32 %v537, 4294901760
    %539 = vmatpush.msra.mxu0 %v538
    %v540 = vand.u32 %v470, 4294901760
    %v541 = vsub.f32 %v470, %v540
    %v542 = vand.u32 %v541, 4294901760
    %v543 = vsub.f32 %v541, %v542
    %v544 = vand.u32 %v543, 4294901760
    %545 = vmatpush.msra.mxu0 %v544
    %v546 = vand.u32 %v469, 4294901760
    %v547 = vsub.f32 %v469, %v546
    %v548 = vand.u32 %v547, 4294901760
    %v549 = vsub.f32 %v547, %v548
    %v550 = vand.u32 %v549, 4294901760
    %551 = vmatpush.msra.mxu0 %v550
    %v552 = vand.u32 %v468, 4294901760
    %v553 = vsub.f32 %v468, %v552
    %v554 = vand.u32 %v553, 4294901760
    %v555 = vsub.f32 %v553, %v554
    %v556 = vand.u32 %v555, 4294901760
    %557 = vmatpush.msra.mxu0 %v556
    %v558 = vand.u32 %v467, 4294901760
    %v559 = vsub.f32 %v467, %v558
    %v560 = vand.u32 %v559, 4294901760
    %v561 = vsub.f32 %v559, %v560
    %v562 = vand.u32 %v561, 4294901760
    %563 = vmatpush.msra.mxu0 %v562
    %v564 = vand.u32 %v466, 4294901760
    %v565 = vsub.f32 %v466, %v564
    %v566 = vand.u32 %v565, 4294901760
    %v567 = vsub.f32 %v565, %v566
    %v568 = vand.u32 %v567, 4294901760
    %569 = vmatpush.msra.mxu0 %v568
    %v570 = vand.u32 %v465, 4294901760
    %v571 = vsub.f32 %v465, %v570
    %v572 = vand.u32 %v571, 4294901760
    %v573 = vsub.f32 %v571, %v572
    %v574 = vand.u32 %v573, 4294901760
    %575 = vmatpush.msra.mxu0 %v574
    %v576 = vand.u32 %v464, 4294901760
    %v577 = vsub.f32 %v464, %v576
    %v578 = vand.u32 %v577, 4294901760
    %v579 = vsub.f32 %v577, %v578
    %v580 = vand.u32 %v579, 4294901760
    %581 = vmatpush.msra.mxu0 %v580
    %v582 = vand.u32 %v463, 4294901760
    %v583 = vsub.f32 %v463, %v582
    %v584 = vand.u32 %v583, 4294901760
    %v585 = vsub.f32 %v583, %v584
    %v586 = vand.u32 %v585, 4294901760
    %587 = vmatpush.msra.mxu0 %v586
    %v588 = vand.u32 %v462, 4294901760
    %v589 = vsub.f32 %v462, %v588
    %v590 = vand.u32 %v589, 4294901760
    %v591 = vsub.f32 %v589, %v590
    %v592 = vand.u32 %v591, 4294901760
    %593 = vmatpush.msra.mxu0 %v592
    %v594 = vand.u32 %v461, 4294901760
    %v595 = vsub.f32 %v461, %v594
    %v596 = vand.u32 %v595, 4294901760
    %v597 = vsub.f32 %v595, %v596
    %v598 = vand.u32 %v597, 4294901760
    %599 = vmatpush.msra.mxu0 %v598
    %v600 = vand.u32 %v460, 4294901760
    %v601 = vsub.f32 %v460, %v600
    %v602 = vand.u32 %v601, 4294901760
    %v603 = vsub.f32 %v601, %v602
    %v604 = vand.u32 %v603, 4294901760
    %605 = vmatpush.msra.mxu0 %v604
    %v606 = vand.u32 %v459, 4294901760
    %v607 = vsub.f32 %v459, %v606
    %v608 = vand.u32 %v607, 4294901760
    %v609 = vsub.f32 %v607, %v608
    %v610 = vand.u32 %v609, 4294901760
    %611 = vmatpush.msra.mxu0 %v610
    %v612 = vand.u32 %v458, 4294901760
    %613 = vmatmul.f32.gmra.mxu0 %v612
    %v614 = vpop.f32.mrf.mxu0
    %v615 = vadd.f32 %v514, %v614
    %616 = vdwg.mxu0
    %v617 = vand.u32 %v474, 4294901760
    %v618 = vsub.f32 %v474, %v617
    %619 = vmatpush.msra.mxu0 %v618
    %v620 = vand.u32 %v473, 4294901760
    %v621 = vsub.f32 %v473, %v620
    %622 = vmatpush.msra.mxu0 %v621
    %v623 = vand.u32 %v472, 4294901760
    %v624 = vsub.f32 %v472, %v623
    %625 = vmatpush.msra.mxu0 %v624
    %v626 = vand.u32 %v471, 4294901760
    %v627 = vsub.f32 %v471, %v626
    %628 = vmatpush.msra.mxu0 %v627
    %v629 = vand.u32 %v470, 4294901760
    %v630 = vsub.f32 %v470, %v629
    %631 = vmatpush.msra.mxu0 %v630
    %v632 = vand.u32 %v469, 4294901760
    %v633 = vsub.f32 %v469, %v632
    %634 = vmatpush.msra.mxu0 %v633
    %v635 = vand.u32 %v468, 4294901760
    %v636 = vsub.f32 %v468, %v635
    %637 = vmatpush.msra.mxu0 %v636
    %v638 = vand.u32 %v467, 4294901760
    %v639 = vsub.f32 %v467, %v638
    %640 = vmatpush.msra.mxu0 %v639
    %v641 = vand.u32 %v466, 4294901760
    %v642 = vsub.f32 %v466, %v641
    %643 = vmatpush.msra.mxu0 %v642
    %v644 = vand.u32 %v465, 4294901760
    %v645 = vsub.f32 %v465, %v644
    %646 = vmatpush.msra.mxu0 %v645
    %v647 = vand.u32 %v464, 4294901760
    %v648 = vsub.f32 %v464, %v647
    %649 = vmatpush.msra.mxu0 %v648
    %v650 = vand.u32 %v463, 4294901760
    %v651 = vsub.f32 %v463, %v650
    %652 = vmatpush.msra.mxu0 %v651
    %v653 = vand.u32 %v462, 4294901760
    %v654 = vsub.f32 %v462, %v653
    %655 = vmatpush.msra.mxu0 %v654
    %v656 = vand.u32 %v461, 4294901760
    %v657 = vsub.f32 %v461, %v656
    %658 = vmatpush.msra.mxu0 %v657
    %v659 = vand.u32 %v460, 4294901760
    %v660 = vsub.f32 %v460, %v659
    %661 = vmatpush.msra.mxu0 %v660
    %v662 = vand.u32 %v459, 4294901760
    %v663 = vsub.f32 %v459, %v662
    %664 = vmatpush.msra.mxu0 %v663
    %v665 = vand.u32 %v458, 4294901760
    %v666 = vsub.f32 %v458, %v665
    %667 = vmatmul.f32.gmra.mxu0 %v666
    %v668 = vpop.f32.mrf.mxu0
    %v669 = vadd.f32 %v615, %v668
    %670 = vdwg.mxu0
    %v671 = vand.u32 %v474, 4294901760
    %672 = vmatpush.msra.mxu0 %v671
    %v673 = vand.u32 %v473, 4294901760
    %674 = vmatpush.msra.mxu0 %v673
    %v675 = vand.u32 %v472, 4294901760
    %676 = vmatpush.msra.mxu0 %v675
    %v677 = vand.u32 %v471, 4294901760
    %678 = vmatpush.msra.mxu0 %v677
    %v679 = vand.u32 %v470, 4294901760
    %680 = vmatpush.msra.mxu0 %v679
    %v681 = vand.u32 %v469, 4294901760
    %682 = vmatpush.msra.mxu0 %v681
    %v683 = vand.u32 %v468, 4294901760
    %684 = vmatpush.msra.mxu0 %v683
    %v685 = vand.u32 %v467, 4294901760
    %686 = vmatpush.msra.mxu0 %v685
    %v687 = vand.u32 %v466, 4294901760
    %688 = vmatpush.msra.mxu0 %v687
    %v689 = vand.u32 %v465, 4294901760
    %690 = vmatpush.msra.mxu0 %v689
    %v691 = vand.u32 %v464, 4294901760
    %692 = vmatpush.msra.mxu0 %v691
    %v693 = vand.u32 %v463, 4294901760
    %694 = vmatpush.msra.mxu0 %v693
    %v695 = vand.u32 %v462, 4294901760
    %696 = vmatpush.msra.mxu0 %v695
    %v697 = vand.u32 %v461, 4294901760
    %698 = vmatpush.msra.mxu0 %v697
    %v699 = vand.u32 %v460, 4294901760
    %700 = vmatpush.msra.mxu0 %v699
    %v701 = vand.u32 %v459, 4294901760
    %702 = vmatpush.msra.mxu0 %v701
    %v703 = vand.u32 %v458, 4294901760
    %v704 = vsub.f32 %v458, %v703
    %v705 = vand.u32 %v704, 4294901760
    %706 = vmatmul.f32.gmra.mxu0 %v705
    %v707 = vpop.f32.mrf.mxu0
    %v708 = vadd.f32 %v669, %v707
    %709 = vdwg.mxu0
    %v710 = vand.u32 %v474, 4294901760
    %v711 = vsub.f32 %v474, %v710
    %v712 = vand.u32 %v711, 4294901760
    %713 = vmatpush.msra.mxu0 %v712
    %v714 = vand.u32 %v473, 4294901760
    %v715 = vsub.f32 %v473, %v714
    %v716 = vand.u32 %v715, 4294901760
    %717 = vmatpush.msra.mxu0 %v716
    %v718 = vand.u32 %v472, 4294901760
    %v719 = vsub.f32 %v472, %v718
    %v720 = vand.u32 %v719, 4294901760
    %721 = vmatpush.msra.mxu0 %v720
    %v722 = vand.u32 %v471, 4294901760
    %v723 = vsub.f32 %v471, %v722
    %v724 = vand.u32 %v723, 4294901760
    %725 = vmatpush.msra.mxu0 %v724
    %v726 = vand.u32 %v470, 4294901760
    %v727 = vsub.f32 %v470, %v726
    %v728 = vand.u32 %v727, 4294901760
    %729 = vmatpush.msra.mxu0 %v728
    %v730 = vand.u32 %v469, 4294901760
    %v731 = vsub.f32 %v469, %v730
    %v732 = vand.u32 %v731, 4294901760
    %733 = vmatpush.msra.mxu0 %v732
    %v734 = vand.u32 %v468, 4294901760
    %v735 = vsub.f32 %v468, %v734
    %v736 = vand.u32 %v735, 4294901760
    %737 = vmatpush.msra.mxu0 %v736
    %v738 = vand.u32 %v467, 4294901760
    %v739 = vsub.f32 %v467, %v738
    %v740 = vand.u32 %v739, 4294901760
    %741 = vmatpush.msra.mxu0 %v740
    %v742 = vand.u32 %v466, 4294901760
    %v743 = vsub.f32 %v466, %v742
    %v744 = vand.u32 %v743, 4294901760
    %745 = vmatpush.msra.mxu0 %v744
    %v746 = vand.u32 %v465, 4294901760
    %v747 = vsub.f32 %v465, %v746
    %v748 = vand.u32 %v747, 4294901760
    %749 = vmatpush.msra.mxu0 %v748
    %v750 = vand.u32 %v464, 4294901760
    %v751 = vsub.f32 %v464, %v750
    %v752 = vand.u32 %v751, 4294901760
    %753 = vmatpush.msra.mxu0 %v752
    %v754 = vand.u32 %v463, 4294901760
    %v755 = vsub.f32 %v463, %v754
    %v756 = vand.u32 %v755, 4294901760
    %757 = vmatpush.msra.mxu0 %v756
    %v758 = vand.u32 %v462, 4294901760
    %v759 = vsub.f32 %v462, %v758
    %v760 = vand.u32 %v759, 4294901760
    %761 = vmatpush.msra.mxu0 %v760
    %v762 = vand.u32 %v461, 4294901760
    %v763 = vsub.f32 %v461, %v762
    %v764 = vand.u32 %v763, 4294901760
    %765 = vmatpush.msra.mxu0 %v764
    %v766 = vand.u32 %v460, 4294901760
    %v767 = vsub.f32 %v460, %v766
    %v768 = vand.u32 %v767, 4294901760
    %769 = vmatpush.msra.mxu0 %v768
    %v770 = vand.u32 %v459, 4294901760
    %v771 = vsub.f32 %v459, %v770
    %v772 = vand.u32 %v771, 4294901760
    %773 = vmatpush.msra.mxu0 %v772
    %v774 = vand.u32 %v458, 4294901760
    %775 = vmatmul.f32.gmra.mxu0 %v774
    %v776 = vpop.f32.mrf.mxu0
    %v777 = vadd.f32 %v708, %v776
    %778 = vdwg.mxu0
    %v779 = vand.u32 %v474, 4294901760
    %780 = vmatpush.msra.mxu0 %v779
    %v781 = vand.u32 %v473, 4294901760
    %782 = vmatpush.msra.mxu0 %v781
    %v783 = vand.u32 %v472, 4294901760
    %784 = vmatpush.msra.mxu0 %v783
    %v785 = vand.u32 %v471, 4294901760
    %786 = vmatpush.msra.mxu0 %v785
    %v787 = vand.u32 %v470, 4294901760
    %788 = vmatpush.msra.mxu0 %v787
    %v789 = vand.u32 %v469, 4294901760
    %790 = vmatpush.msra.mxu0 %v789
    %v791 = vand.u32 %v468, 4294901760
    %792 = vmatpush.msra.mxu0 %v791
    %v793 = vand.u32 %v467, 4294901760
    %794 = vmatpush.msra.mxu0 %v793
    %v795 = vand.u32 %v466, 4294901760
    %796 = vmatpush.msra.mxu0 %v795
    %v797 = vand.u32 %v465, 4294901760
    %798 = vmatpush.msra.mxu0 %v797
    %v799 = vand.u32 %v464, 4294901760
    %800 = vmatpush.msra.mxu0 %v799
    %v801 = vand.u32 %v463, 4294901760
    %802 = vmatpush.msra.mxu0 %v801
    %v803 = vand.u32 %v462, 4294901760
    %804 = vmatpush.msra.mxu0 %v803
    %v805 = vand.u32 %v461, 4294901760
    %806 = vmatpush.msra.mxu0 %v805
    %v807 = vand.u32 %v460, 4294901760
    %808 = vmatpush.msra.mxu0 %v807
    %v809 = vand.u32 %v459, 4294901760
    %810 = vmatpush.msra.mxu0 %v809
    %v811 = vand.u32 %v458, 4294901760
    %812 = vmatmul.f32.gmra.mxu0 %v811
    %v813 = vpop.f32.mrf.mxu0
    %v814 = vadd.f32 %v777, %v813
    %815 = vdwg.mxu0
    %v816 = vsub.f32 %v458, %v814
    %v817 = vmul.f32 %v816, %v816
    %v818 = vand.u32 %v474, 4294901760
    %819 = vmatpush.msra.mxu0 %v818
    %v820 = vand.u32 %v473, 4294901760
    %821 = vmatpush.msra.mxu0 %v820
    %v822 = vand.u32 %v472, 4294901760
    %823 = vmatpush.msra.mxu0 %v822
    %v824 = vand.u32 %v471, 4294901760
    %825 = vmatpush.msra.mxu0 %v824
    %v826 = vand.u32 %v470, 4294901760
    %827 = vmatpush.msra.mxu0 %v826
    %v828 = vand.u32 %v469, 4294901760
    %829 = vmatpush.msra.mxu0 %v828
    %v830 = vand.u32 %v468, 4294901760
    %831 = vmatpush.msra.mxu0 %v830
    %v832 = vand.u32 %v467, 4294901760
    %833 = vmatpush.msra.mxu0 %v832
    %v834 = vand.u32 %v466, 4294901760
    %835 = vmatpush.msra.mxu0 %v834
    %v836 = vand.u32 %v465, 4294901760
    %837 = vmatpush.msra.mxu0 %v836
    %v838 = vand.u32 %v464, 4294901760
    %839 = vmatpush.msra.mxu0 %v838
    %v840 = vand.u32 %v463, 4294901760
    %841 = vmatpush.msra.mxu0 %v840
    %v842 = vand.u32 %v462, 4294901760
    %843 = vmatpush.msra.mxu0 %v842
    %v844 = vand.u32 %v461, 4294901760
    %845 = vmatpush.msra.mxu0 %v844
    %v846 = vand.u32 %v460, 4294901760
    %847 = vmatpush.msra.mxu0 %v846
    %v848 = vand.u32 %v459, 4294901760
    %849 = vmatpush.msra.mxu0 %v848
    %v850 = vand.u32 %v817, 4294901760
    %v851 = vsub.f32 %v817, %v850
    %v852 = vand.u32 %v851, 4294901760
    %v853 = vsub.f32 %v851, %v852
    %v854 = vand.u32 %v853, 4294901760
    %855 = vmatmul.f32.gmra.mxu0 %v854
    %v856 = vpop.f32.mrf.mxu0
    %v857 = vadd.f32 1e-05, %v856
    %858 = vdwg.mxu0
    %v859 = vand.u32 %v474, 4294901760
    %v860 = vsub.f32 %v474, %v859
    %v861 = vand.u32 %v860, 4294901760
    %v862 = vsub.f32 %v860, %v861
    %v863 = vand.u32 %v862, 4294901760
    %864 = vmatpush.msra.mxu0 %v863
    %v865 = vand.u32 %v473, 4294901760
    %v866 = vsub.f32 %v473, %v865
    %v867 = vand.u32 %v866, 4294901760
    %v868 = vsub.f32 %v866, %v867
    %v869 = vand.u32 %v868, 4294901760
    %870 = vmatpush.msra.mxu0 %v869
    %v871 = vand.u32 %v472, 4294901760
    %v872 = vsub.f32 %v472, %v871
    %v873 = vand.u32 %v872, 4294901760
    %v874 = vsub.f32 %v872, %v873
    %v875 = vand.u32 %v874, 4294901760
    %876 = vmatpush.msra.mxu0 %v875
    %v877 = vand.u32 %v471, 4294901760
    %v878 = vsub.f32 %v471, %v877
    %v879 = vand.u32 %v878, 4294901760
    %v880 = vsub.f32 %v878, %v879
    %v881 = vand.u32 %v880, 4294901760
    %882 = vmatpush.msra.mxu0 %v881
    %v883 = vand.u32 %v470, 4294901760
    %v884 = vsub.f32 %v470, %v883
    %v885 = vand.u32 %v884, 4294901760
    %v886 = vsub.f32 %v884, %v885
    %v887 = vand.u32 %v886, 4294901760
    %888 = vmatpush.msra.mxu0 %v887
    %v889 = vand.u32 %v469, 4294901760
    %v890 = vsub.f32 %v469, %v889
    %v891 = vand.u32 %v890, 4294901760
    %v892 = vsub.f32 %v890, %v891
    %v893 = vand.u32 %v892, 4294901760
    %894 = vmatpush.msra.mxu0 %v893
    %v895 = vand.u32 %v468, 4294901760
    %v896 = vsub.f32 %v468, %v895
    %v897 = vand.u32 %v896, 4294901760
    %v898 = vsub.f32 %v896, %v897
    %v899 = vand.u32 %v898, 4294901760
    %900 = vmatpush.msra.mxu0 %v899
    %v901 = vand.u32 %v467, 4294901760
    %v902 = vsub.f32 %v467, %v901
    %v903 = vand.u32 %v902, 4294901760
    %v904 = vsub.f32 %v902, %v903
    %v905 = vand.u32 %v904, 4294901760
    %906 = vmatpush.msra.mxu0 %v905
    %v907 = vand.u32 %v466, 4294901760
    %v908 = vsub.f32 %v466, %v907
    %v909 = vand.u32 %v908, 4294901760
    %v910 = vsub.f32 %v908, %v909
    %v911 = vand.u32 %v910, 4294901760
    %912 = vmatpush.msra.mxu0 %v911
    %v913 = vand.u32 %v465, 4294901760
    %v914 = vsub.f32 %v465, %v913
    %v915 = vand.u32 %v914, 4294901760
    %v916 = vsub.f32 %v914, %v915
    %v917 = vand.u32 %v916, 4294901760
    %918 = vmatpush.msra.mxu0 %v917
    %v919 = vand.u32 %v464, 4294901760
    %v920 = vsub.f32 %v464, %v919
    %v921 = vand.u32 %v920, 4294901760
    %v922 = vsub.f32 %v920, %v921
    %v923 = vand.u32 %v922, 4294901760
    %924 = vmatpush.msra.mxu0 %v923
    %v925 = vand.u32 %v463, 4294901760
    %v926 = vsub.f32 %v463, %v925
    %v927 = vand.u32 %v926, 4294901760
    %v928 = vsub.f32 %v926, %v927
    %v929 = vand.u32 %v928, 4294901760
    %930 = vmatpush.msra.mxu0 %v929
    %v931 = vand.u32 %v462, 4294901760
    %v932 = vsub.f32 %v462, %v931
    %v933 = vand.u32 %v932, 4294901760
    %v934 = vsub.f32 %v932, %v933
    %v935 = vand.u32 %v934, 4294901760
    %936 = vmatpush.msra.mxu0 %v935
    %v937 = vand.u32 %v461, 4294901760
    %v938 = vsub.f32 %v461, %v937
    %v939 = vand.u32 %v938, 4294901760
    %v940 = vsub.f32 %v938, %v939
    %v941 = vand.u32 %v940, 4294901760
    %942 = vmatpush.msra.mxu0 %v941
    %v943 = vand.u32 %v460, 4294901760
    %v944 = vsub.f32 %v460, %v943
    %v945 = vand.u32 %v944, 4294901760
    %v946 = vsub.f32 %v944, %v945
    %v947 = vand.u32 %v946, 4294901760
    %948 = vmatpush.msra.mxu0 %v947
    %v949 = vand.u32 %v459, 4294901760
    %v950 = vsub.f32 %v459, %v949
    %v951 = vand.u32 %v950, 4294901760
    %v952 = vsub.f32 %v950, %v951
    %v953 = vand.u32 %v952, 4294901760
    %954 = vmatpush.msra.mxu0 %v953
    %v955 = vand.u32 %v817, 4294901760
    %956 = vmatmul.f32.gmra.mxu0 %v955
    %v957 = vpop.f32.mrf.mxu0
    %v958 = vadd.f32 %v857, %v957
    %959 = vdwg.mxu0
    %v960 = vand.u32 %v474, 4294901760
    %v961 = vsub.f32 %v474, %v960
    %962 = vmatpush.msra.mxu0 %v961
    %v963 = vand.u32 %v473, 4294901760
    %v964 = vsub.f32 %v473, %v963
    %965 = vmatpush.msra.mxu0 %v964
    %v966 = vand.u32 %v472, 4294901760
    %v967 = vsub.f32 %v472, %v966
    %968 = vmatpush.msra.mxu0 %v967
    %v969 = vand.u32 %v471, 4294901760
    %v970 = vsub.f32 %v471, %v969
    %971 = vmatpush.msra.mxu0 %v970
    %v972 = vand.u32 %v470, 4294901760
    %v973 = vsub.f32 %v470, %v972
    %974 = vmatpush.msra.mxu0 %v973
    %v975 = vand.u32 %v469, 4294901760
    %v976 = vsub.f32 %v469, %v975
    %977 = vmatpush.msra.mxu0 %v976
    %v978 = vand.u32 %v468, 4294901760
    %v979 = vsub.f32 %v468, %v978
    %980 = vmatpush.msra.mxu0 %v979
    %v981 = vand.u32 %v467, 4294901760
    %v982 = vsub.f32 %v467, %v981
    %983 = vmatpush.msra.mxu0 %v982
    %v984 = vand.u32 %v466, 4294901760
    %v985 = vsub.f32 %v466, %v984
    %986 = vmatpush.msra.mxu0 %v985
    %v987 = vand.u32 %v465, 4294901760
    %v988 = vsub.f32 %v465, %v987
    %989 = vmatpush.msra.mxu0 %v988
    %v990 = vand.u32 %v464, 4294901760
    %v991 = vsub.f32 %v464, %v990
    %992 = vmatpush.msra.mxu0 %v991
    %v993 = vand.u32 %v463, 4294901760
    %v994 = vsub.f32 %v463, %v993
    %995 = vmatpush.msra.mxu0 %v994
    %v996 = vand.u32 %v462, 4294901760
    %v997 = vsub.f32 %v462, %v996
    %998 = vmatpush.msra.mxu0 %v997
    %v999 = vand.u32 %v461, 4294901760
    %v1000 = vsub.f32 %v461, %v999
    %1001 = vmatpush.msra.mxu0 %v1000
    %v1002 = vand.u32 %v460, 4294901760
    %v1003 = vsub.f32 %v460, %v1002
    %1004 = vmatpush.msra.mxu0 %v1003
    %v1005 = vand.u32 %v459, 4294901760
    %v1006 = vsub.f32 %v459, %v1005
    %1007 = vmatpush.msra.mxu0 %v1006
    %v1008 = vand.u32 %v817, 4294901760
    %v1009 = vsub.f32 %v817, %v1008
    %1010 = vmatmul.f32.gmra.mxu0 %v1009
    %v1011 = vpop.f32.mrf.mxu0
    %v1012 = vadd.f32 %v958, %v1011
    %1013 = vdwg.mxu0
    %v1014 = vand.u32 %v474, 4294901760
    %1015 = vmatpush.msra.mxu0 %v1014
    %v1016 = vand.u32 %v473, 4294901760
    %1017 = vmatpush.msra.mxu0 %v1016
    %v1018 = vand.u32 %v472, 4294901760
    %1019 = vmatpush.msra.mxu0 %v1018
    %v1020 = vand.u32 %v471, 4294901760
    %1021 = vmatpush.msra.mxu0 %v1020
    %v1022 = vand.u32 %v470, 4294901760
    %1023 = vmatpush.msra.mxu0 %v1022
    %v1024 = vand.u32 %v469, 4294901760
    %1025 = vmatpush.msra.mxu0 %v1024
    %v1026 = vand.u32 %v468, 4294901760
    %1027 = vmatpush.msra.mxu0 %v1026
    %v1028 = vand.u32 %v467, 4294901760
    %1029 = vmatpush.msra.mxu0 %v1028
    %v1030 = vand.u32 %v466, 4294901760
    %1031 = vmatpush.msra.mxu0 %v1030
    %v1032 = vand.u32 %v465, 4294901760
    %1033 = vmatpush.msra.mxu0 %v1032
    %v1034 = vand.u32 %v464, 4294901760
    %1035 = vmatpush.msra.mxu0 %v1034
    %v1036 = vand.u32 %v463, 4294901760
    %1037 = vmatpush.msra.mxu0 %v1036
    %v1038 = vand.u32 %v462, 4294901760
    %1039 = vmatpush.msra.mxu0 %v1038
    %v1040 = vand.u32 %v461, 4294901760
    %1041 = vmatpush.msra.mxu0 %v1040
    %v1042 = vand.u32 %v460, 4294901760
    %1043 = vmatpush.msra.mxu0 %v1042
    %v1044 = vand.u32 %v459, 4294901760
    %1045 = vmatpush.msra.mxu0 %v1044
    %v1046 = vand.u32 %v817, 4294901760
    %v1047 = vsub.f32 %v817, %v1046
    %v1048 = vand.u32 %v1047, 4294901760
    %1049 = vmatmul.f32.gmra.mxu0 %v1048
    %v1050 = vpop.f32.mrf.mxu0
    %v1051 = vadd.f32 %v1012, %v1050
    %1052 = vdwg.mxu0
    %v1053 = vand.u32 %v474, 4294901760
    %v1054 = vsub.f32 %v474, %v1053
    %v1055 = vand.u32 %v1054, 4294901760
    %1056 = vmatpush.msra.mxu0 %v1055
    %v1057 = vand.u32 %v473, 4294901760
    %v1058 = vsub.f32 %v473, %v1057
    %v1059 = vand.u32 %v1058, 4294901760
    %1060 = vmatpush.msra.mxu0 %v1059
    %v1061 = vand.u32 %v472, 4294901760
    %v1062 = vsub.f32 %v472, %v1061
    %v1063 = vand.u32 %v1062, 4294901760
    %1064 = vmatpush.msra.mxu0 %v1063
    %v1065 = vand.u32 %v471, 4294901760
    %v1066 = vsub.f32 %v471, %v1065
    %v1067 = vand.u32 %v1066, 4294901760
    %1068 = vmatpush.msra.mxu0 %v1067
    %v1069 = vand.u32 %v470, 4294901760
    %v1070 = vsub.f32 %v470, %v1069
    %v1071 = vand.u32 %v1070, 4294901760
    %1072 = vmatpush.msra.mxu0 %v1071
    %v1073 = vand.u32 %v469, 4294901760
    %v1074 = vsub.f32 %v469, %v1073
    %v1075 = vand.u32 %v1074, 4294901760
    %1076 = vmatpush.msra.mxu0 %v1075
    %v1077 = vand.u32 %v468, 4294901760
    %v1078 = vsub.f32 %v468, %v1077
    %v1079 = vand.u32 %v1078, 4294901760
    %1080 = vmatpush.msra.mxu0 %v1079
    %v1081 = vand.u32 %v467, 4294901760
    %v1082 = vsub.f32 %v467, %v1081
    %v1083 = vand.u32 %v1082, 4294901760
    %1084 = vmatpush.msra.mxu0 %v1083
    %v1085 = vand.u32 %v466, 4294901760
    %v1086 = vsub.f32 %v466, %v1085
    %v1087 = vand.u32 %v1086, 4294901760
    %1088 = vmatpush.msra.mxu0 %v1087
    %v1089 = vand.u32 %v465, 4294901760
    %v1090 = vsub.f32 %v465, %v1089
    %v1091 = vand.u32 %v1090, 4294901760
    %1092 = vmatpush.msra.mxu0 %v1091
    %v1093 = vand.u32 %v464, 4294901760
    %v1094 = vsub.f32 %v464, %v1093
    %v1095 = vand.u32 %v1094, 4294901760
    %1096 = vmatpush.msra.mxu0 %v1095
    %v1097 = vand.u32 %v463, 4294901760
    %v1098 = vsub.f32 %v463, %v1097
    %v1099 = vand.u32 %v1098, 4294901760
    %1100 = vmatpush.msra.mxu0 %v1099
    %v1101 = vand.u32 %v462, 4294901760
    %v1102 = vsub.f32 %v462, %v1101
    %v1103 = vand.u32 %v1102, 4294901760
    %1104 = vmatpush.msra.mxu0 %v1103
    %v1105 = vand.u32 %v461, 4294901760
    %v1106 = vsub.f32 %v461, %v1105
    %v1107 = vand.u32 %v1106, 4294901760
    %1108 = vmatpush.msra.mxu0 %v1107
    %v1109 = vand.u32 %v460, 4294901760
    %v1110 = vsub.f32 %v460, %v1109
    %v1111 = vand.u32 %v1110, 4294901760
    %1112 = vmatpush.msra.mxu0 %v1111
    %v1113 = vand.u32 %v459, 4294901760
    %v1114 = vsub.f32 %v459, %v1113
    %v1115 = vand.u32 %v1114, 4294901760
    %1116 = vmatpush.msra.mxu0 %v1115
    %v1117 = vand.u32 %v817, 4294901760
    %1118 = vmatmul.f32.gmra.mxu0 %v1117
    %v1119 = vpop.f32.mrf.mxu0
    %v1120 = vadd.f32 %v1051, %v1119
    %1121 = vdwg.mxu0
    %v1122 = vand.u32 %v474, 4294901760
    %1123 = vmatpush.msra.mxu0 %v1122
    %v1124 = vand.u32 %v473, 4294901760
    %1125 = vmatpush.msra.mxu0 %v1124
    %v1126 = vand.u32 %v472, 4294901760
    %1127 = vmatpush.msra.mxu0 %v1126
    %v1128 = vand.u32 %v471, 4294901760
    %1129 = vmatpush.msra.mxu0 %v1128
    %v1130 = vand.u32 %v470, 4294901760
    %1131 = vmatpush.msra.mxu0 %v1130
    %v1132 = vand.u32 %v469, 4294901760
    %1133 = vmatpush.msra.mxu0 %v1132
    %v1134 = vand.u32 %v468, 4294901760
    %1135 = vmatpush.msra.mxu0 %v1134
    %v1136 = vand.u32 %v467, 4294901760
    %1137 = vmatpush.msra.mxu0 %v1136
    %v1138 = vand.u32 %v466, 4294901760
    %1139 = vmatpush.msra.mxu0 %v1138
    %v1140 = vand.u32 %v465, 4294901760
    %1141 = vmatpush.msra.mxu0 %v1140
    %v1142 = vand.u32 %v464, 4294901760
    %1143 = vmatpush.msra.mxu0 %v1142
    %v1144 = vand.u32 %v463, 4294901760
    %1145 = vmatpush.msra.mxu0 %v1144
    %v1146 = vand.u32 %v462, 4294901760
    %1147 = vmatpush.msra.mxu0 %v1146
    %v1148 = vand.u32 %v461, 4294901760
    %1149 = vmatpush.msra.mxu0 %v1148
    %v1150 = vand.u32 %v460, 4294901760
    %1151 = vmatpush.msra.mxu0 %v1150
    %v1152 = vand.u32 %v459, 4294901760
    %1153 = vmatpush.msra.mxu0 %v1152
    %v1154 = vand.u32 %v817, 4294901760
    %1155 = vmatmul.f32.gmra.mxu0 %v1154
    %v1156 = vpop.f32.mrf.mxu0
    %v1157 = vadd.f32 %v1120, %v1156
    %1158 = vdwg.mxu0
    %v1159 = vrsqrt.pop %v1157
    %v1160 = vmul.f32 %v1159, %v1157
    %v1161 = vmul.f32 %v1160, %v1159
    %v1162 = vmul.f32 0.5, %v1161
    %v1163 = vsub.f32 1.5, %v1162
    %v1164 = vmul.f32 %v1159, %v1163
    %vm1165 = vweird.f32 %v1157
    %vm1166 = vweird.f32 %v1159
    %vm1167 = vmor %vm1165, %vm1166
    %v1168 = vsel %vm1167, %v1159, %v1164
    %v1169 = vmul.f32 %v816, %v1168
    %v1170 = vld [vmem:[%s5] sm:$0x1]
    %v1172 = vperm.slane %v1170, 0
    %v1174 = vmul.f32 %v1169, %v1172
    %v1175 = vld [vmem:[%s6] sm:$0x1]
    %v1177 = vperm.slane %v1175, 0
    %v1179 = vadd.f32 %v1174, %v1177
    %v1180 = vmax.f32 %v1179, 0.0
    %v1181 = vld [vmem:[%s7] sm:$0x1]
    %v1183 = vperm.slane %v1181, 0
    %v1185 = vmul.f32 %v1180, %v1183
    %v1186 = vld [vmem:[%s9] sm:$0xff]
    %v1187 = vld [vmem:[%s9 + $0x8] sm:$0xff]
    %v1188 = vld [vmem:[%s9 + $0x10] sm:$0xff]
    %v1189 = vld [vmem:[%s9 + $0x18] sm:$0xff]
    %v1190 = vld [vmem:[%s9 + $0x20] sm:$0xff]
    %v1191 = vld [vmem:[%s9 + $0x28] sm:$0xff]
    %v1192 = vld [vmem:[%s9 + $0x30] sm:$0xff]
    %v1193 = vld [vmem:[%s9 + $0x38] sm:$0xff]
    %v1194 = vld [vmem:[%s9 + $0x40] sm:$0xff]
    %v1195 = vld [vmem:[%s9 + $0x48] sm:$0xff]
    %v1196 = vld [vmem:[%s9 + $0x50] sm:$0xff]
    %v1197 = vld [vmem:[%s9 + $0x58] sm:$0xff]
    %v1198 = vld [vmem:[%s9 + $0x60] sm:$0xff]
    %v1199 = vld [vmem:[%s9 + $0x68] sm:$0xff]
    %v1200 = vld [vmem:[%s9 + $0x70] sm:$0xff]
    %v1201 = vld [vmem:[%s9 + $0x78] sm:$0xff]
    %v1202 = vand.u32 %v1201, 4294901760
    %1203 = vmatpush.msra.mxu0 %v1202
    %v1204 = vand.u32 %v1200, 4294901760
    %1205 = vmatpush.msra.mxu0 %v1204
    %v1206 = vand.u32 %v1199, 4294901760
    %1207 = vmatpush.msra.mxu0 %v1206
    %v1208 = vand.u32 %v1198, 4294901760
    %1209 = vmatpush.msra.mxu0 %v1208
    %v1210 = vand.u32 %v1197, 4294901760
    %1211 = vmatpush.msra.mxu0 %v1210
    %v1212 = vand.u32 %v1196, 4294901760
    %1213 = vmatpush.msra.mxu0 %v1212
    %v1214 = vand.u32 %v1195, 4294901760
    %1215 = vmatpush.msra.mxu0 %v1214
    %v1216 = vand.u32 %v1194, 4294901760
    %1217 = vmatpush.msra.mxu0 %v1216
    %v1218 = vand.u32 %v1193, 4294901760
    %1219 = vmatpush.msra.mxu0 %v1218
    %v1220 = vand.u32 %v1192, 4294901760
    %1221 = vmatpush.msra.mxu0 %v1220
    %v1222 = vand.u32 %v1191, 4294901760
    %1223 = vmatpush.msra.mxu0 %v1222
    %v1224 = vand.u32 %v1190, 4294901760
    %1225 = vmatpush.msra.mxu0 %v1224
    %v1226 = vand.u32 %v1189, 4294901760
    %1227 = vmatpush.msra.mxu0 %v1226
    %v1228 = vand.u32 %v1188, 4294901760
    %1229 = vmatpush.msra.mxu0 %v1228
    %v1230 = vand.u32 %v1187, 4294901760
    %1231 = vmatpush.msra.mxu0 %v1230
    %v1232 = vand.u32 %v1186, 4294901760
    %1233 = vmatpush.msra.mxu0 %v1232
    %v1234 = vand.u32 %v1185, 4294901760
    %v1235 = vsub.f32 %v1185, %v1234
    %v1236 = vand.u32 %v1235, 4294901760
    %v1237 = vsub.f32 %v1235, %v1236
    %v1238 = vand.u32 %v1237, 4294901760
    %1239 = vmatmul.f32.gmra.mxu0 %v1238
    %v1240 = vpop.f32.mrf.mxu0
    %v1241 = vadd.f32 0.0, %v1240
    %1242 = vdwg.mxu0
    %v1243 = vand.u32 %v1201, 4294901760
    %v1244 = vsub.f32 %v1201, %v1243
    %v1245 = vand.u32 %v1244, 4294901760
    %v1246 = vsub.f32 %v1244, %v1245
    %v1247 = vand.u32 %v1246, 4294901760
    %1248 = vmatpush.msra.mxu0 %v1247
    %v1249 = vand.u32 %v1200, 4294901760
    %v1250 = vsub.f32 %v1200, %v1249
    %v1251 = vand.u32 %v1250, 4294901760
    %v1252 = vsub.f32 %v1250, %v1251
    %v1253 = vand.u32 %v1252, 4294901760
    %1254 = vmatpush.msra.mxu0 %v1253
    %v1255 = vand.u32 %v1199, 4294901760
    %v1256 = vsub.f32 %v1199, %v1255
    %v1257 = vand.u32 %v1256, 4294901760
    %v1258 = vsub.f32 %v1256, %v1257
    %v1259 = vand.u32 %v1258, 4294901760
    %1260 = vmatpush.msra.mxu0 %v1259
    %v1261 = vand.u32 %v1198, 4294901760
    %v1262 = vsub.f32 %v1198, %v1261
    %v1263 = vand.u32 %v1262, 4294901760
    %v1264 = vsub.f32 %v1262, %v1263
    %v1265 = vand.u32 %v1264, 4294901760
    %1266 = vmatpush.msra.mxu0 %v1265
    %v1267 = vand.u32 %v1197, 4294901760
    %v1268 = vsub.f32 %v1197, %v1267
    %v1269 = vand.u32 %v1268, 4294901760
    %v1270 = vsub.f32 %v1268, %v1269
    %v1271 = vand.u32 %v1270, 4294901760
    %1272 = vmatpush.msra.mxu0 %v1271
    %v1273 = vand.u32 %v1196, 4294901760
    %v1274 = vsub.f32 %v1196, %v1273
    %v1275 = vand.u32 %v1274, 4294901760
    %v1276 = vsub.f32 %v1274, %v1275
    %v1277 = vand.u32 %v1276, 4294901760
    %1278 = vmatpush.msra.mxu0 %v1277
    %v1279 = vand.u32 %v1195, 4294901760
    %v1280 = vsub.f32 %v1195, %v1279
    %v1281 = vand.u32 %v1280, 4294901760
    %v1282 = vsub.f32 %v1280, %v1281
    %v1283 = vand.u32 %v1282, 4294901760
    %1284 = vmatpush.msra.mxu0 %v1283
    %v1285 = vand.u32 %v1194, 4294901760
    %v1286 = vsub.f32 %v1194, %v1285
    %v1287 = vand.u32 %v1286, 4294901760
    %v1288 = vsub.f32 %v1286, %v1287
    %v1289 = vand.u32 %v1288, 4294901760
    %1290 = vmatpush.msra.mxu0 %v1289
    %v1291 = vand.u32 %v1193, 4294901760
    %v1292 = vsub.f32 %v1193, %v1291
    %v1293 = vand.u32 %v1292, 4294901760
    %v1294 = vsub.f32 %v1292, %v1293
    %v1295 = vand.u32 %v1294, 4294901760
    %1296 = vmatpush.msra.mxu0 %v1295
    %v1297 = vand.u32 %v1192, 4294901760
    %v1298 = vsub.f32 %v1192, %v1297
    %v1299 = vand.u32 %v1298, 4294901760
    %v1300 = vsub.f32 %v1298, %v1299
    %v1301 = vand.u32 %v1300, 4294901760
    %1302 = vmatpush.msra.mxu0 %v1301
    %v1303 = vand.u32 %v1191, 4294901760
    %v1304 = vsub.f32 %v1191, %v1303
    %v1305 = vand.u32 %v1304, 4294901760
    %v1306 = vsub.f32 %v1304, %v1305
    %v1307 = vand.u32 %v1306, 4294901760
    %1308 = vmatpush.msra.mxu0 %v1307
    %v1309 = vand.u32 %v1190, 4294901760
    %v1310 = vsub.f32 %v1190, %v1309
    %v1311 = vand.u32 %v1310, 4294901760
    %v1312 = vsub.f32 %v1310, %v1311
    %v1313 = vand.u32 %v1312, 4294901760
    %1314 = vmatpush.msra.mxu0 %v1313
    %v1315 = vand.u32 %v1189, 4294901760
    %v1316 = vsub.f32 %v1189, %v1315
    %v1317 = vand.u32 %v1316, 4294901760
    %v1318 = vsub.f32 %v1316, %v1317
    %v1319 = vand.u32 %v1318, 4294901760
    %1320 = vmatpush.msra.mxu0 %v1319
    %v1321 = vand.u32 %v1188, 4294901760
    %v1322 = vsub.f32 %v1188, %v1321
    %v1323 = vand.u32 %v1322, 4294901760
    %v1324 = vsub.f32 %v1322, %v1323
    %v1325 = vand.u32 %v1324, 4294901760
    %1326 = vmatpush.msra.mxu0 %v1325
    %v1327 = vand.u32 %v1187, 4294901760
    %v1328 = vsub.f32 %v1187, %v1327
    %v1329 = vand.u32 %v1328, 4294901760
    %v1330 = vsub.f32 %v1328, %v1329
    %v1331 = vand.u32 %v1330, 4294901760
    %1332 = vmatpush.msra.mxu0 %v1331
    %v1333 = vand.u32 %v1186, 4294901760
    %v1334 = vsub.f32 %v1186, %v1333
    %v1335 = vand.u32 %v1334, 4294901760
    %v1336 = vsub.f32 %v1334, %v1335
    %v1337 = vand.u32 %v1336, 4294901760
    %1338 = vmatpush.msra.mxu0 %v1337
    %v1339 = vand.u32 %v1185, 4294901760
    %1340 = vmatmul.f32.gmra.mxu0 %v1339
    %v1341 = vpop.f32.mrf.mxu0
    %v1342 = vadd.f32 %v1241, %v1341
    %1343 = vdwg.mxu0
    %v1344 = vand.u32 %v1201, 4294901760
    %v1345 = vsub.f32 %v1201, %v1344
    %1346 = vmatpush.msra.mxu0 %v1345
    %v1347 = vand.u32 %v1200, 4294901760
    %v1348 = vsub.f32 %v1200, %v1347
    %1349 = vmatpush.msra.mxu0 %v1348
    %v1350 = vand.u32 %v1199, 4294901760
    %v1351 = vsub.f32 %v1199, %v1350
    %1352 = vmatpush.msra.mxu0 %v1351
    %v1353 = vand.u32 %v1198, 4294901760
    %v1354 = vsub.f32 %v1198, %v1353
    %1355 = vmatpush.msra.mxu0 %v1354
    %v1356 = vand.u32 %v1197, 4294901760
    %v1357 = vsub.f32 %v1197, %v1356
    %1358 = vmatpush.msra.mxu0 %v1357
    %v1359 = vand.u32 %v1196, 4294901760
    %v1360 = vsub.f32 %v1196, %v1359
    %1361 = vmatpush.msra.mxu0 %v1360
    %v1362 = vand.u32 %v1195, 4294901760
    %v1363 = vsub.f32 %v1195, %v1362
    %1364 = vmatpush.msra.mxu0 %v1363
    %v1365 = vand.u32 %v1194, 4294901760
    %v1366 = vsub.f32 %v1194, %v1365
    %1367 = vmatpush.msra.mxu0 %v1366
    %v1368 = vand.u32 %v1193, 4294901760
    %v1369 = vsub.f32 %v1193, %v1368
    %1370 = vmatpush.msra.mxu0 %v1369
    %v1371 = vand.u32 %v1192, 4294901760
    %v1372 = vsub.f32 %v1192, %v1371
    %1373 = vmatpush.msra.mxu0 %v1372
    %v1374 = vand.u32 %v1191, 4294901760
    %v1375 = vsub.f32 %v1191, %v1374
    %1376 = vmatpush.msra.mxu0 %v1375
    %v1377 = vand.u32 %v1190, 4294901760
    %v1378 = vsub.f32 %v1190, %v1377
    %1379 = vmatpush.msra.mxu0 %v1378
    %v1380 = vand.u32 %v1189, 4294901760
    %v1381 = vsub.f32 %v1189, %v1380
    %1382 = vmatpush.msra.mxu0 %v1381
    %v1383 = vand.u32 %v1188, 4294901760
    %v1384 = vsub.f32 %v1188, %v1383
    %1385 = vmatpush.msra.mxu0 %v1384
    %v1386 = vand.u32 %v1187, 4294901760
    %v1387 = vsub.f32 %v1187, %v1386
    %1388 = vmatpush.msra.mxu0 %v1387
    %v1389 = vand.u32 %v1186, 4294901760
    %v1390 = vsub.f32 %v1186, %v1389
    %1391 = vmatpush.msra.mxu0 %v1390
    %v1392 = vand.u32 %v1185, 4294901760
    %v1393 = vsub.f32 %v1185, %v1392
    %1394 = vmatmul.f32.gmra.mxu0 %v1393
    %v1395 = vpop.f32.mrf.mxu0
    %v1396 = vadd.f32 %v1342, %v1395
    %1397 = vdwg.mxu0
    %v1398 = vand.u32 %v1201, 4294901760
    %1399 = vmatpush.msra.mxu0 %v1398
    %v1400 = vand.u32 %v1200, 4294901760
    %1401 = vmatpush.msra.mxu0 %v1400
    %v1402 = vand.u32 %v1199, 4294901760
    %1403 = vmatpush.msra.mxu0 %v1402
    %v1404 = vand.u32 %v1198, 4294901760
    %1405 = vmatpush.msra.mxu0 %v1404
    %v1406 = vand.u32 %v1197, 4294901760
    %1407 = vmatpush.msra.mxu0 %v1406
    %v1408 = vand.u32 %v1196, 4294901760
    %1409 = vmatpush.msra.mxu0 %v1408
    %v1410 = vand.u32 %v1195, 4294901760
    %1411 = vmatpush.msra.mxu0 %v1410
    %v1412 = vand.u32 %v1194, 4294901760
    %1413 = vmatpush.msra.mxu0 %v1412
    %v1414 = vand.u32 %v1193, 4294901760
    %1415 = vmatpush.msra.mxu0 %v1414
    %v1416 = vand.u32 %v1192, 4294901760
    %1417 = vmatpush.msra.mxu0 %v1416
    %v1418 = vand.u32 %v1191, 4294901760
    %1419 = vmatpush.msra.mxu0 %v1418
    %v1420 = vand.u32 %v1190, 4294901760
    %1421 = vmatpush.msra.mxu0 %v1420
    %v1422 = vand.u32 %v1189, 4294901760
    %1423 = vmatpush.msra.mxu0 %v1422
    %v1424 = vand.u32 %v1188, 4294901760
    %1425 = vmatpush.msra.mxu0 %v1424
    %v1426 = vand.u32 %v1187, 4294901760
    %1427 = vmatpush.msra.mxu0 %v1426
    %v1428 = vand.u32 %v1186, 4294901760
    %1429 = vmatpush.msra.mxu0 %v1428
    %v1430 = vand.u32 %v1185, 4294901760
    %v1431 = vsub.f32 %v1185, %v1430
    %v1432 = vand.u32 %v1431, 4294901760
    %1433 = vmatmul.f32.gmra.mxu0 %v1432
    %v1434 = vpop.f32.mrf.mxu0
    %v1435 = vadd.f32 %v1396, %v1434
    %1436 = vdwg.mxu0
    %v1437 = vand.u32 %v1201, 4294901760
    %v1438 = vsub.f32 %v1201, %v1437
    %v1439 = vand.u32 %v1438, 4294901760
    %1440 = vmatpush.msra.mxu0 %v1439
    %v1441 = vand.u32 %v1200, 4294901760
    %v1442 = vsub.f32 %v1200, %v1441
    %v1443 = vand.u32 %v1442, 4294901760
    %1444 = vmatpush.msra.mxu0 %v1443
    %v1445 = vand.u32 %v1199, 4294901760
    %v1446 = vsub.f32 %v1199, %v1445
    %v1447 = vand.u32 %v1446, 4294901760
    %1448 = vmatpush.msra.mxu0 %v1447
    %v1449 = vand.u32 %v1198, 4294901760
    %v1450 = vsub.f32 %v1198, %v1449
    %v1451 = vand.u32 %v1450, 4294901760
    %1452 = vmatpush.msra.mxu0 %v1451
    %v1453 = vand.u32 %v1197, 4294901760
    %v1454 = vsub.f32 %v1197, %v1453
    %v1455 = vand.u32 %v1454, 4294901760
    %1456 = vmatpush.msra.mxu0 %v1455
    %v1457 = vand.u32 %v1196, 4294901760
    %v1458 = vsub.f32 %v1196, %v1457
    %v1459 = vand.u32 %v1458, 4294901760
    %1460 = vmatpush.msra.mxu0 %v1459
    %v1461 = vand.u32 %v1195, 4294901760
    %v1462 = vsub.f32 %v1195, %v1461
    %v1463 = vand.u32 %v1462, 4294901760
    %1464 = vmatpush.msra.mxu0 %v1463
    %v1465 = vand.u32 %v1194, 4294901760
    %v1466 = vsub.f32 %v1194, %v1465
    %v1467 = vand.u32 %v1466, 4294901760
    %1468 = vmatpush.msra.mxu0 %v1467
    %v1469 = vand.u32 %v1193, 4294901760
    %v1470 = vsub.f32 %v1193, %v1469
    %v1471 = vand.u32 %v1470, 4294901760
    %1472 = vmatpush.msra.mxu0 %v1471
    %v1473 = vand.u32 %v1192, 4294901760
    %v1474 = vsub.f32 %v1192, %v1473
    %v1475 = vand.u32 %v1474, 4294901760
    %1476 = vmatpush.msra.mxu0 %v1475
    %v1477 = vand.u32 %v1191, 4294901760
    %v1478 = vsub.f32 %v1191, %v1477
    %v1479 = vand.u32 %v1478, 4294901760
    %1480 = vmatpush.msra.mxu0 %v1479
    %v1481 = vand.u32 %v1190, 4294901760
    %v1482 = vsub.f32 %v1190, %v1481
    %v1483 = vand.u32 %v1482, 4294901760
    %1484 = vmatpush.msra.mxu0 %v1483
    %v1485 = vand.u32 %v1189, 4294901760
    %v1486 = vsub.f32 %v1189, %v1485
    %v1487 = vand.u32 %v1486, 4294901760
    %1488 = vmatpush.msra.mxu0 %v1487
    %v1489 = vand.u32 %v1188, 4294901760
    %v1490 = vsub.f32 %v1188, %v1489
    %v1491 = vand.u32 %v1490, 4294901760
    %1492 = vmatpush.msra.mxu0 %v1491
    %v1493 = vand.u32 %v1187, 4294901760
    %v1494 = vsub.f32 %v1187, %v1493
    %v1495 = vand.u32 %v1494, 4294901760
    %1496 = vmatpush.msra.mxu0 %v1495
    %v1497 = vand.u32 %v1186, 4294901760
    %v1498 = vsub.f32 %v1186, %v1497
    %v1499 = vand.u32 %v1498, 4294901760
    %1500 = vmatpush.msra.mxu0 %v1499
    %v1501 = vand.u32 %v1185, 4294901760
    %1502 = vmatmul.f32.gmra.mxu0 %v1501
    %v1503 = vpop.f32.mrf.mxu0
    %v1504 = vadd.f32 %v1435, %v1503
    %1505 = vdwg.mxu0
    %v1506 = vand.u32 %v1201, 4294901760
    %1507 = vmatpush.msra.mxu0 %v1506
    %v1508 = vand.u32 %v1200, 4294901760
    %1509 = vmatpush.msra.mxu0 %v1508
    %v1510 = vand.u32 %v1199, 4294901760
    %1511 = vmatpush.msra.mxu0 %v1510
    %v1512 = vand.u32 %v1198, 4294901760
    %1513 = vmatpush.msra.mxu0 %v1512
    %v1514 = vand.u32 %v1197, 4294901760
    %1515 = vmatpush.msra.mxu0 %v1514
    %v1516 = vand.u32 %v1196, 4294901760
    %1517 = vmatpush.msra.mxu0 %v1516
    %v1518 = vand.u32 %v1195, 4294901760
    %1519 = vmatpush.msra.mxu0 %v1518
    %v1520 = vand.u32 %v1194, 4294901760
    %1521 = vmatpush.msra.mxu0 %v1520
    %v1522 = vand.u32 %v1193, 4294901760
    %1523 = vmatpush.msra.mxu0 %v1522
    %v1524 = vand.u32 %v1192, 4294901760
    %1525 = vmatpush.msra.mxu0 %v1524
    %v1526 = vand.u32 %v1191, 4294901760
    %1527 = vmatpush.msra.mxu0 %v1526
    %v1528 = vand.u32 %v1190, 4294901760
    %1529 = vmatpush.msra.mxu0 %v1528
    %v1530 = vand.u32 %v1189, 4294901760
    %1531 = vmatpush.msra.mxu0 %v1530
    %v1532 = vand.u32 %v1188, 4294901760
    %1533 = vmatpush.msra.mxu0 %v1532
    %v1534 = vand.u32 %v1187, 4294901760
    %1535 = vmatpush.msra.mxu0 %v1534
    %v1536 = vand.u32 %v1186, 4294901760
    %1537 = vmatpush.msra.mxu0 %v1536
    %v1538 = vand.u32 %v1185, 4294901760
    %1539 = vmatmul.f32.gmra.mxu0 %v1538
    %v1540 = vpop.f32.mrf.mxu0
    %v1541 = vadd.f32 %v1504, %v1540
    %1542 = vdwg.mxu0
    %vm1543 = vcmask 261120
    %1544 = vst.msk [vmem:[#allocation5] sm:$0xff] %vm1543, %v1541
    // Predicated region
    $region46: #{tpu_custom_call.1} parent=1 // pred_check
      _
    $region47: #{tpu_custom_call.1} parent=1 // pred_check_branch
      %1546 = sbr.rel (0) target = $region49
    $region48: #{tpu_custom_call.1} parent=1 // pred_region
      %1548 = vsyncadd [#allocation4], 0
      %s1550 = sshll.u32 [#allocation5], 4
      %s1551 = int_to_ptr.vmem [resolvable:$true] %s1550
      %s1552 = sshll.u32 %s10, 4
      %s1553 = int_to_ptr.hbm [resolvable:$true] %s1552
      %1555 = dma.vmem_to_hbm [thread:$0]  %s1551, 128, %s1553, [#allocation4]
    $region49: #{tpu_custom_call.1} parent=1 // pred_fallthru
      _
    // Predicated region
    $region50: #{tpu_custom_call.1} parent=1 // pred_check
      _
    $region51: #{tpu_custom_call.1} parent=1 // pred_check_branch
      %1557 = sbr.rel (0) target = $region53
    $region52: #{tpu_custom_call.1} parent=1 // pred_region
      %1559 = dma.done [#allocation4], 128
    $region53: #{tpu_custom_call.1} parent=1 // pred_fallthru
      _
    %1560 = vsyncpa [#allocation3], 1
    %1561 = vsyncpa [#allocation4], 1

</llo_original>
